<compile_context>
chip_gen: v7x
topology: tpu7x:2x2x1
jax: 0.10.0
libtpu: 0.0.40
codegen_flags: <defaults>
</compile_context>

<pallas_src>
import jax
import jax.numpy as jnp
from jax.experimental import pallas as pl
from jax.experimental.pallas import tpu as pltpu


def mlp_kernel(x_ref, w1_ref, b1_ref, w2_ref, b2_ref, o_ref):
    # fc1 + ReLU: cast activations to bf16 for the MXU, accumulate in f32.
    x = x_ref[...].astype(jnp.bfloat16)                 # (tn, 784)
    h = jnp.dot(x, w1_ref[...], preferred_element_type=jnp.float32)
    h = jnp.maximum(h + b1_ref[...], 0.0)               # f32 bias/ReLU (v5e-safe)
    # fc2: bf16 MXU path, f32 accumulation; lane-dense (tn, 128) store.
    y = jnp.dot(h.astype(jnp.bfloat16), w2_ref[...],
                preferred_element_type=jnp.float32)
    o_ref[...] = (y + b2_ref[...]).astype(o_ref.dtype)


def _round_up(x, m):
    return ((x + m - 1) // m) * m


def _pick_tile(n, tile_n):
    """Batch-tile rows: sublane-aligned; for large batches a multiple of 256
    and capped so the grid keeps >= 2 steps (v7x has 2 TensorCores)."""
    tn = min(tile_n, n)
    if tn <= 256:
        return max(8, _round_up(tn, 8))
    tn = min(tn, _round_up(pl.cdiv(n, 2), 256))   # >= 2 grid steps when possible
    return max(256, (tn // 256) * 256)


def mnist_mlp(x, w1, b1, w2, b2, *, tile_n=1024, out_dtype=jnp.float32):
    """x: (N, 784); w1: (784, 256); b1: (256,); w2: (256, 10); b2: (10,).

    Weights are stored (in_features, out_features) so the kernel computes
    x @ W + b, matching nn.Linear semantics.
    """
    N, D_in = x.shape
    H = w1.shape[1]
    D_out = w2.shape[1]
    D_out_p = pl.cdiv(D_out, 128) * 128          # 10 -> 128 (lane-dense output)

    tn = _pick_tile(N, tile_n)
    grid = (pl.cdiv(N, tn),)

    # One-time weight prep (tiny vs. the x stream; ideally weights live in bf16
    # upstream). Zero padding of w2/b2 keeps the extra output lanes exact.
    w1_b = w1.astype(jnp.bfloat16)
    b1_b = b1.reshape(1, H).astype(jnp.float32)
    w2_p = jnp.zeros((H, D_out_p), jnp.bfloat16).at[:, :D_out].set(
        w2.astype(jnp.bfloat16))
    b2_p = jnp.zeros((1, D_out_p), jnp.float32).at[:, :D_out].set(
        b2.reshape(1, D_out).astype(jnp.float32))

    out_p = pl.pallas_call(
        mlp_kernel,
        out_shape=jax.ShapeDtypeStruct((N, D_out_p), out_dtype),
        grid_spec=pl.GridSpec(
            grid=grid,
            in_specs=[
                # Batch-tiled activations; full-extent (784) K block, no padding.
                pl.BlockSpec((tn, D_in), lambda i: (i, 0)),
                # Weights / biases: constant index_map -> VMEM-resident across
                # all batch-tile grid steps (no re-DMA).
                pl.BlockSpec((D_in, H), lambda i: (0, 0)),
                pl.BlockSpec((1, H), lambda i: (0, 0)),
                pl.BlockSpec((H, D_out_p), lambda i: (0, 0)),
                pl.BlockSpec((1, D_out_p), lambda i: (0, 0)),
            ],
            out_specs=pl.BlockSpec((tn, D_out_p), lambda i: (i, 0)),
        ),
        compiler_params=pltpu.CompilerParams(
            # Batch axis is independent -> shard across TensorCores on v7x;
            # harmless on single-TC v5e/v6e.
            dimension_semantics=("parallel",),
        ),
    )(x, w1_b, b1_b, w2_p, b2_p)

    # Only the lane padding (10 -> 128) is sliced off; batch dim is unpadded.
    return out_p[:, :D_out]


def reference_bf16(x, w1, b1, w2, b2):
    """Pure-JAX reference mirroring the kernel's bf16-input / f32-accum math."""
    xb = x.astype(jnp.bfloat16).astype(jnp.float32)
    w1b = w1.astype(jnp.bfloat16).astype(jnp.float32)
    w2b = w2.astype(jnp.bfloat16).astype(jnp.float32)
    h = jnp.maximum(xb @ w1b + b1, 0.0)
    hb = h.astype(jnp.bfloat16).astype(jnp.float32)
    return hb @ w2b + b2


if __name__ == "__main__":
    key = jax.random.PRNGKey(0)
    k_x, k_w1, k_b1, k_w2, k_b2 = jax.random.split(key, 5)

    # Module-fixed feature dims; N=300 with the default tile policy gives
    # tn=256, grid=2, and a partial (clipped) last batch block -> exercises the
    # multi-tile + out-of-bounds-tail paths while staying small.
    N, D_in, H, D_out = 300, 784, 256, 10

    x = jax.random.normal(k_x, (N, D_in), dtype=jnp.float32)
    w1 = (jax.random.uniform(k_w1, (D_in, H), minval=-1.0, maxval=1.0)
          / jnp.sqrt(D_in)).astype(jnp.float32)
    b1 = (jax.random.uniform(k_b1, (H,), minval=-1.0, maxval=1.0)
          / jnp.sqrt(D_in)).astype(jnp.float32)
    w2 = (jax.random.uniform(k_w2, (H, D_out), minval=-1.0, maxval=1.0)
          / jnp.sqrt(H)).astype(jnp.float32)
    b2 = (jax.random.uniform(k_b2, (D_out,), minval=-1.0, maxval=1.0)
          / jnp.sqrt(H)).astype(jnp.float32)

    out = mnist_mlp(x, w1, b1, w2, b2)
    jax.block_until_ready(out)

    ref = reference_bf16(x, w1, b1, w2, b2)
    assert out.shape == (N, D_out)
    assert jnp.allclose(out, ref, atol=1e-2, rtol=1e-2), \
        f"max abs err {jnp.max(jnp.abs(out - ref))}"

    print("KERNEL_OK")
</pallas_src>

<mosaic_0001>
module attributes {stable_mosaic.version = 11 : i64} {
  func.func @mlp_kernel(%arg0: i32, %arg1: memref<256x784xf32, #tpu.memory_space<vmem>>, %arg2: memref<784x256xbf16, #tpu.memory_space<vmem>>, %arg3: memref<1x256xf32, #tpu.memory_space<vmem>>, %arg4: memref<256x128xbf16, #tpu.memory_space<vmem>>, %arg5: memref<1x128xf32, #tpu.memory_space<vmem>>, %arg6: memref<256x128xf32, #tpu.memory_space<vmem>>) attributes {dimension_semantics = [#tpu.dimension_semantics<parallel>], iteration_bounds = array<i64: 2>, scalar_prefetch = 0 : i64, scratch_operands = 0 : i64, tpu.core_type = #tpu.core_type<tc>, window_params = [{transform_indices = @transform_0, window_bounds = array<i64: 256, 784>}, {pipeline_mode = #tpu.pipeline_mode<synchronous>, transform_indices = @transform_1, window_bounds = array<i64: 784, 256>}, {pipeline_mode = #tpu.pipeline_mode<synchronous>, transform_indices = @transform_2, window_bounds = array<i64: 1, 256>}, {pipeline_mode = #tpu.pipeline_mode<synchronous>, transform_indices = @transform_3, window_bounds = array<i64: 256, 128>}, {pipeline_mode = #tpu.pipeline_mode<synchronous>, transform_indices = @transform_4, window_bounds = array<i64: 1, 128>}, {transform_indices = @transform_5, window_bounds = array<i64: 256, 128>}]} {
    %c0 = arith.constant 0 : index
    %c0_0 = arith.constant 0 : index
    %0 = vector.load %arg1[%c0, %c0_0] : memref<256x784xf32, #tpu.memory_space<vmem>>, vector<256x784xf32>
    %1 = arith.truncf %0 : vector<256x784xf32> to vector<256x784xbf16>
    %c0_1 = arith.constant 0 : index
    %c0_2 = arith.constant 0 : index
    %2 = vector.load %arg2[%c0_1, %c0_2] : memref<784x256xbf16, #tpu.memory_space<vmem>>, vector<784x256xbf16>
    %cst = arith.constant dense<0.000000e+00> : vector<256x256xf32>
    %3 = tpu.matmul %1, %2, %cst {dimension_numbers = #tpu.dot_dimension_numbers<[1], [0], [0], [1], [0, 0, 1, 1], [], []>} : vector<256x784xbf16>, vector<784x256xbf16>, vector<256x256xf32> -> vector<256x256xf32>
    %c0_3 = arith.constant 0 : index
    %c0_4 = arith.constant 0 : index
    %4 = vector.load %arg3[%c0_3, %c0_4] : memref<1x256xf32, #tpu.memory_space<vmem>>, vector<1x256xf32>
    %5 = vector.broadcast %4 : vector<1x256xf32> to vector<256x256xf32>
    %6 = arith.addf %3, %5 : vector<256x256xf32>
    %cst_5 = arith.constant 0.000000e+00 : f32
    %7 = vector.broadcast %cst_5 : f32 to vector<256x256xf32>
    %8 = arith.maximumf %6, %7 : vector<256x256xf32>
    %9 = arith.truncf %8 : vector<256x256xf32> to vector<256x256xbf16>
    %c0_6 = arith.constant 0 : index
    %c0_7 = arith.constant 0 : index
    %10 = vector.load %arg4[%c0_6, %c0_7] : memref<256x128xbf16, #tpu.memory_space<vmem>>, vector<256x128xbf16>
    %cst_8 = arith.constant dense<0.000000e+00> : vector<256x128xf32>
    %11 = tpu.matmul %9, %10, %cst_8 {dimension_numbers = #tpu.dot_dimension_numbers<[1], [0], [0], [1], [0, 0, 1, 1], [], []>} : vector<256x256xbf16>, vector<256x128xbf16>, vector<256x128xf32> -> vector<256x128xf32>
    %c0_9 = arith.constant 0 : index
    %c0_10 = arith.constant 0 : index
    %12 = vector.load %arg5[%c0_9, %c0_10] : memref<1x128xf32, #tpu.memory_space<vmem>>, vector<1x128xf32>
    %13 = vector.broadcast %12 : vector<1x128xf32> to vector<256x128xf32>
    %14 = arith.addf %11, %13 : vector<256x128xf32>
    %c0_11 = arith.constant 0 : index
    %c0_12 = arith.constant 0 : index
    %15 = vector.load %arg6[%c0_11, %c0_12] : memref<256x128xf32, #tpu.memory_space<vmem>>, vector<256x128xf32>
    tpu.vector_store %arg6[%c0_11, %c0_12], %14 {strides = array<i32>} : memref<256x128xf32, #tpu.memory_space<vmem>>, vector<256x128xf32>,
    return
  }
  func.func @transform_0(%arg0: i32) -> (i32, i32) {
    %c0_i32 = arith.constant 0 : i32
    %c0_i32_0 = arith.constant 0 : i32
    return %arg0, %c0_i32 : i32, i32
  }
  func.func @transform_1(%arg0: i32) -> (i32, i32) {
    %c0_i32 = arith.constant 0 : i32
    %c0_i32_0 = arith.constant 0 : i32
    %c0_i32_1 = arith.constant 0 : i32
    return %c0_i32, %c0_i32_0 : i32, i32
  }
  func.func @transform_2(%arg0: i32) -> (i32, i32) {
    %c0_i32 = arith.constant 0 : i32
    %c0_i32_0 = arith.constant 0 : i32
    %c0_i32_1 = arith.constant 0 : i32
    return %c0_i32, %c0_i32_0 : i32, i32
  }
  func.func @transform_3(%arg0: i32) -> (i32, i32) {
    %c0_i32 = arith.constant 0 : i32
    %c0_i32_0 = arith.constant 0 : i32
    %c0_i32_1 = arith.constant 0 : i32
    return %c0_i32, %c0_i32_0 : i32, i32
  }
  func.func @transform_4(%arg0: i32) -> (i32, i32) {
    %c0_i32 = arith.constant 0 : i32
    %c0_i32_0 = arith.constant 0 : i32
    %c0_i32_1 = arith.constant 0 : i32
    return %c0_i32, %c0_i32_0 : i32, i32
  }
  func.func @transform_5(%arg0: i32) -> (i32, i32) {
    %c0_i32 = arith.constant 0 : i32
    %c0_i32_0 = arith.constant 0 : i32
    return %arg0, %c0_i32 : i32, i32
  }
}

</mosaic_0001>

<llo_original>
// kernel: tpu_custom_call.1
$region0: #{tpu_custom_call.1}
  #allocation0 [shape = 'u32[]', space=smem, size = 0x4, offset = 0x4, fixed_abs, tag = 'smem constant byte address 0x4 - core index']
  #allocation1 [shape = 'u32[144,128]{1,0:T(1,128)}', space=vmem, size = 0x12000, scoped, tag = 'internal scratch']
  %s0 = inlined_call_operand.hbm [shape: f32[300,784], index: 0, kind: input, shape index: {}]
  %s1 = inlined_call_operand.hbm [shape: bf16[784,256], index: 1, kind: input, shape index: {}]
  %s2 = inlined_call_operand.hbm [shape: f32[1,256], index: 2, kind: input, shape index: {}]
  %s3 = inlined_call_operand.hbm [shape: bf16[256,128], index: 3, kind: input, shape index: {}]
  %s4 = inlined_call_operand.hbm [shape: f32[1,128], index: 4, kind: input, shape index: {}]
  %s5 = inlined_call_operand.hbm [shape: f32[300,128], index: 5, kind: output, shape index: {}]
  %s6 = sld [smem:[#allocation0]]
  $region73: #{tpu_custom_call.1} parent=0
    _
  %s8 = ssub.s32 1, %s6
  %s9 = scalar_select 0, %s8, %s6
  $region1: #{tpu_custom_call.1} parent=0
    #allocation2 [shape = 'u8[1835008]{0}', space=vmem, size = 0x1c0000, scoped, tag = 'input window, operand 0']
    #allocation3 [shape = 's32[2]{0}', space=sflag, size = 0x8, scoped, tag = 'scoped memory for tpu_custom_call.1']
    #allocation4 [shape = 's32[2]{0}', space=sflag, size = 0x8, scoped, tag = 'scoped memory for tpu_custom_call.1']
    #allocation5 [shape = 'u8[401408]{0}', space=vmem, size = 0x62000, scoped, tag = 'input window, operand 1, single buffered']
    #allocation6 [shape = 's32[1]{0}', space=sflag, size = 0x4, scoped, tag = 'scoped memory for tpu_custom_call.1']
    #allocation7 [shape = 'u8[1024]{0}', space=vmem, size = 0x400, scoped, tag = 'input window, operand 2, single buffered']
    #allocation8 [shape = 'u8[65536]{0}', space=vmem, size = 0x10000, scoped, tag = 'input window, operand 3, single buffered']
    #allocation9 [shape = 's32[1]{0}', space=sflag, size = 0x4, scoped, tag = 'scoped memory for tpu_custom_call.1']
    #allocation10 [shape = 'u8[512]{0}', space=vmem, size = 0x400, scoped, tag = 'input window, operand 4, single buffered']
    #allocation11 [shape = 'u8[262144]{0}', space=vmem, size = 0x40000, scoped, tag = 'output window, operand 0']
    %10 = vsyncpa [#allocation3], 0
    %s11 = scalar_lea.sflag [#allocation3], 1
    %12 = vsyncpa %s11, 0
    %13 = vsyncpa [#allocation6], 0
    %14 = vsyncpa [#allocation9], 0
    %15 = vsyncpa [#allocation4], 0
    %s16 = scalar_lea.sflag [#allocation4], 1
    %17 = vsyncpa %s16, 0
    loop: start=0, step=1, limit=4
    $region2: #{tpu_custom_call.1} parent=1 // loop_pre_header
      _
    $region3: #{tpu_custom_call.1} parent=1 // loop_header
      %s19 = sphi 0, %s23
      %p20 = scmp.ge.s32.totalorder %s19, 4
      %s29 = sphi 0, %s31
      %s32 = sphi 0, %s29
      %s33 = sphi 0, %s32
      %s49 = sphi 0, %s33
      %s53 = sphi 0, %s53
      %s55 = sphi 0, %s53
      %s56 = sphi 0, %s55
      %s70 = sphi 0, %s56
      %s74 = sphi 0, %s74
      %s76 = sphi 0, %s74
      %s77 = sphi 0, %s76
      %s91 = sphi 0, %s77
      %s95 = sphi 0, %s95
      %s97 = sphi 0, %s95
      %s98 = sphi 0, %s97
      %s112 = sphi 0, %s98
      %s116 = sphi 0, %s116
      %s118 = sphi 0, %s116
      %s119 = sphi 0, %s118
      %s133 = sphi 0, %s119
      %s139 = sphi 0, %s141
      %s142 = sphi 0, %s139
      %s143 = sphi 0, %s142
      %s159 = sphi 0, %s143
    $region4: #{tpu_custom_call.1} parent=1 // loop_header_branch
      %22 = sbr.rel (%p20) target = $region8
    $region5: #{tpu_custom_call.1} parent=1 // loop_body
      %s24 = ssub.s32 %s19, 1
      %s25 = ssub.s32 %s19, 2
      %s26 = sadd.s32 %s19, 1
      %s27 = ssub.s32 %s19, %s26
      %p28 = scmp.eq.s32.totalorder %s27, 0
      %s30 = sadd.s32 %s29, 1
      %s31 = scalar_select %p28, %s29, %s30
      %p34 = pneg %p28
      %p35 = scmp.eq.s32.totalorder %s19, 1
      %p36 = por %p34, %p35
      %p37 = scmp.ne.s32.totalorder %s29, %s32
      %p38 = scmp.eq.s32.totalorder %s19, 0
      %p39 = por %p37, %p38
      %p40 = scmp.ne.s32.totalorder %s29, %s32
      %p41 = scmp.eq.s32.totalorder %s24, 1
      %p42 = por %p40, %p41
      %p43 = scmp.ne.s32.totalorder %s32, %s33
      %p44 = scmp.eq.s32.totalorder %s24, 0
      %p45 = por %p43, %p44
      %p46 = scmp.ne.s32.totalorder %s32, %s33
      %p47 = scmp.eq.s32.totalorder %s25, 1
      %p48 = por %p46, %p47
      %p50 = scmp.ne.s32.totalorder %s33, %s49
      %p51 = scmp.eq.s32.totalorder %s25, 0
      %p52 = por %p50, %p51
      %s54 = sadd.s32 %s53, 1
      %p57 = scmp.eq.s32.totalorder %s19, 1
      %p58 = scmp.ne.s32.totalorder %s53, %s55
      %p59 = scmp.eq.s32.totalorder %s19, 0
      %p60 = por %p58, %p59
      %p61 = scmp.ne.s32.totalorder %s53, %s55
      %p62 = scmp.eq.s32.totalorder %s24, 1
      %p63 = por %p61, %p62
      %p64 = scmp.ne.s32.totalorder %s55, %s56
      %p65 = scmp.eq.s32.totalorder %s24, 0
      %p66 = por %p64, %p65
      %p67 = scmp.ne.s32.totalorder %s55, %s56
      %p68 = scmp.eq.s32.totalorder %s25, 1
      %p69 = por %p67, %p68
      %p71 = scmp.ne.s32.totalorder %s56, %s70
      %p72 = scmp.eq.s32.totalorder %s25, 0
      %p73 = por %p71, %p72
      %s75 = sadd.s32 %s74, 1
      %p78 = scmp.eq.s32.totalorder %s19, 1
      %p79 = scmp.ne.s32.totalorder %s74, %s76
      %p80 = scmp.eq.s32.totalorder %s19, 0
      %p81 = por %p79, %p80
      %p82 = scmp.ne.s32.totalorder %s74, %s76
      %p83 = scmp.eq.s32.totalorder %s24, 1
      %p84 = por %p82, %p83
      %p85 = scmp.ne.s32.totalorder %s76, %s77
      %p86 = scmp.eq.s32.totalorder %s24, 0
      %p87 = por %p85, %p86
      %p88 = scmp.ne.s32.totalorder %s76, %s77
      %p89 = scmp.eq.s32.totalorder %s25, 1
      %p90 = por %p88, %p89
      %p92 = scmp.ne.s32.totalorder %s77, %s91
      %p93 = scmp.eq.s32.totalorder %s25, 0
      %p94 = por %p92, %p93
      %s96 = sadd.s32 %s95, 1
      %p99 = scmp.eq.s32.totalorder %s19, 1
      %p100 = scmp.ne.s32.totalorder %s95, %s97
      %p101 = scmp.eq.s32.totalorder %s19, 0
      %p102 = por %p100, %p101
      %p103 = scmp.ne.s32.totalorder %s95, %s97
      %p104 = scmp.eq.s32.totalorder %s24, 1
      %p105 = por %p103, %p104
      %p106 = scmp.ne.s32.totalorder %s97, %s98
      %p107 = scmp.eq.s32.totalorder %s24, 0
      %p108 = por %p106, %p107
      %p109 = scmp.ne.s32.totalorder %s97, %s98
      %p110 = scmp.eq.s32.totalorder %s25, 1
      %p111 = por %p109, %p110
      %p113 = scmp.ne.s32.totalorder %s98, %s112
      %p114 = scmp.eq.s32.totalorder %s25, 0
      %p115 = por %p113, %p114
      %s117 = sadd.s32 %s116, 1
      %p120 = scmp.eq.s32.totalorder %s19, 1
      %p121 = scmp.ne.s32.totalorder %s116, %s118
      %p122 = scmp.eq.s32.totalorder %s19, 0
      %p123 = por %p121, %p122
      %p124 = scmp.ne.s32.totalorder %s116, %s118
      %p125 = scmp.eq.s32.totalorder %s24, 1
      %p126 = por %p124, %p125
      %p127 = scmp.ne.s32.totalorder %s118, %s119
      %p128 = scmp.eq.s32.totalorder %s24, 0
      %p129 = por %p127, %p128
      %p130 = scmp.ne.s32.totalorder %s118, %s119
      %p131 = scmp.eq.s32.totalorder %s25, 1
      %p132 = por %p130, %p131
      %p134 = scmp.ne.s32.totalorder %s119, %s133
      %p135 = scmp.eq.s32.totalorder %s25, 0
      %p136 = por %p134, %p135
      %s137 = ssub.s32 %s19, %s26
      %p138 = scmp.eq.s32.totalorder %s137, 0
      %s140 = sadd.s32 %s139, 1
      %s141 = scalar_select %p138, %s139, %s140
      %p144 = pneg %p138
      %p145 = scmp.eq.s32.totalorder %s19, 1
      %p146 = por %p144, %p145
      %p147 = scmp.ne.s32.totalorder %s139, %s142
      %p148 = scmp.eq.s32.totalorder %s19, 0
      %p149 = por %p147, %p148
      %p150 = scmp.ne.s32.totalorder %s139, %s142
      %p151 = scmp.eq.s32.totalorder %s24, 1
      %p152 = por %p150, %p151
      %p153 = scmp.ne.s32.totalorder %s142, %s143
      %p154 = scmp.eq.s32.totalorder %s24, 0
      %p155 = por %p153, %p154
      %p156 = scmp.ne.s32.totalorder %s142, %s143
      %p157 = scmp.eq.s32.totalorder %s25, 1
      %p158 = por %p156, %p157
      %p160 = scmp.ne.s32.totalorder %s143, %s159
      %p161 = scmp.eq.s32.totalorder %s25, 0
      %p162 = por %p160, %p161
      %p163 = scmp.le.s32.totalorder 1, %s19
      %p164 = scmp.lt.s32.totalorder %s19, 3
      %p165 = pnand %p163, %p164
      %p166 = pneg %p165
      // Predicated region
      $region9: #{tpu_custom_call.1} parent=5 // pred_check
        _
      $region10: #{tpu_custom_call.1} parent=5 // pred_check_branch
        %168 = sbr.rel (%p165) target = $region12
      $region11: #{tpu_custom_call.1} parent=5 // pred_region
        %s169 = ssub.s32 %s19, 1
        // Predicated region
        $region13: #{tpu_custom_call.1} parent=11 // pred_check
          %p170 = pneg %p66
        $region14: #{tpu_custom_call.1} parent=11 // pred_check_branch
          %172 = sbr.rel (%p170) target = $region16
        $region15: #{tpu_custom_call.1} parent=11 // pred_region
          %s174 = ssub.s32 12544, 12544
          %175 = vsyncadd [#allocation6], %s174
          %s176 = sshll.u32 [#allocation5], 4
          %s177 = int_to_ptr.vmem [resolvable:$true] %s176
          %182 = dma.hbm_to_vmem [thread:$0]  %s1, 12544, %s177, [#allocation6], 128, 128, 8
        $region16: #{tpu_custom_call.1} parent=11 // pred_fallthru
          _
        // Predicated region
        $region17: #{tpu_custom_call.1} parent=11 // pred_check
          %p183 = pneg %p87
        $region18: #{tpu_custom_call.1} parent=11 // pred_check_branch
          %185 = sbr.rel (%p183) target = $region20
        $region19: #{tpu_custom_call.1} parent=11 // pred_region
          %s187 = ssub.s32 32, 32
          %188 = vsyncadd [#allocation6], %s187
          %s190 = sshll.u32 [#allocation7], 4
          %s191 = int_to_ptr.vmem [resolvable:$true] %s190
          %193 = dma.hbm_to_vmem [thread:$0]  %s2, 32, %s191, [#allocation6]
        $region20: #{tpu_custom_call.1} parent=11 // pred_fallthru
          _
        // Predicated region
        $region21: #{tpu_custom_call.1} parent=11 // pred_check
          %p194 = pneg %p108
        $region22: #{tpu_custom_call.1} parent=11 // pred_check_branch
          %196 = sbr.rel (%p194) target = $region24
        $region23: #{tpu_custom_call.1} parent=11 // pred_region
          %s198 = ssub.s32 2048, 2048
          %199 = vsyncadd [#allocation9], %s198
          %s200 = sshll.u32 [#allocation8], 4
          %s201 = int_to_ptr.vmem [resolvable:$true] %s200
          %206 = dma.hbm_to_vmem [thread:$0]  %s3, 2048, %s201, [#allocation9], 64, 64, 4
        $region24: #{tpu_custom_call.1} parent=11 // pred_fallthru
          _
        // Predicated region
        $region25: #{tpu_custom_call.1} parent=11 // pred_check
          %p207 = pneg %p129
        $region26: #{tpu_custom_call.1} parent=11 // pred_check_branch
          %209 = sbr.rel (%p207) target = $region28
        $region27: #{tpu_custom_call.1} parent=11 // pred_region
          %s211 = ssub.s32 16, 16
          %212 = vsyncadd [#allocation9], %s211
          %s214 = sshll.u32 [#allocation10], 4
          %s215 = int_to_ptr.vmem [resolvable:$true] %s214
          %217 = dma.hbm_to_vmem [thread:$0]  %s4, 16, %s215, [#allocation9]
        $region28: #{tpu_custom_call.1} parent=11 // pred_fallthru
          _
      $region12: #{tpu_custom_call.1} parent=5 // pred_fallthru
        _
      %p218 = scmp.lt.s32.totalorder %s19, 2
      // Predicated region
      $region29: #{tpu_custom_call.1} parent=5 // pred_check
        %p219 = pneg %p218
      $region30: #{tpu_custom_call.1} parent=5 // pred_check_branch
        %221 = sbr.rel (%p219) target = $region32
      $region31: #{tpu_custom_call.1} parent=5 // pred_region
        // Predicated region
        $region33: #{tpu_custom_call.1} parent=31 // pred_check
          %p222 = pneg %p39
        $region34: #{tpu_custom_call.1} parent=31 // pred_check_branch
          %224 = sbr.rel (%p222) target = $region36
        $region35: #{tpu_custom_call.1} parent=31 // pred_region
          %s225 = sand.u32 %s29, 1
          %s226 = scalar_lea.sflag [#allocation3], %s225
          %s227 = sand.u32 %s29, 1
          %s228 = smul.addr %s227, 1792
          %s229 = scalar_lea.vmem [#allocation2], %s228
          %s230 = smul.u32 32, %s19
          %s231 = ssub.s32 38, %s230
          %p232 = scmp.lt.s32.totalorder %s231, 32
          %s233 = scalar_select %p232, %s231, 32
          %s234 = smul.u32 128, %s233
          %s235 = smul.u32 %s234, 7
          %s237 = ssub.s32 28672, %s235
          %238 = vsyncadd %s226, %s237
          %p239 = scmp.ne.s32.totalorder 0, %s235
          %s240 = smul.addr %s230, 7
          %s241 = smul.addr %s240, 128
          %s242 = scalar_lea.hbm %s0, %s241
          %s243 = smul.u32 56, %s233
          %s244 = sshll.u32 %s229, 4
          %s245 = int_to_ptr.vmem [resolvable:$true] %s244
          %s246 = sshll.u32 %s243, 4
          %250 = dma.hbm_to_vmem [thread:$0]  (%p239), %s242, %s246, %s245, %s226, 896, 896, 56
        $region36: #{tpu_custom_call.1} parent=31 // pred_fallthru
          _
      $region32: #{tpu_custom_call.1} parent=5 // pred_fallthru
        _
      %p251 = scmp.le.s32.totalorder 1, %s19
      %p252 = scmp.lt.s32.totalorder %s19, 3
      %p253 = pnand %p251, %p252
      %p254 = pneg %p253
      // Predicated region
      $region37: #{tpu_custom_call.1} parent=5 // pred_check
        _
      $region38: #{tpu_custom_call.1} parent=5 // pred_check_branch
        %256 = sbr.rel (%p253) target = $region40
      $region39: #{tpu_custom_call.1} parent=5 // pred_region
        %s257 = ssub.s32 %s19, 1
        %s258 = sand.u32 %s32, 1
        %s259 = scalar_lea.sflag [#allocation3], %s258
        %s260 = sand.u32 %s32, 1
        %s261 = smul.addr %s260, 1792
        %s262 = scalar_lea.vmem [#allocation2], %s261
        // Predicated region
        $region41: #{tpu_custom_call.1} parent=39 // pred_check
          %p263 = pneg %p45
        $region42: #{tpu_custom_call.1} parent=39 // pred_check_branch
          %265 = sbr.rel (%p263) target = $region44
        $region43: #{tpu_custom_call.1} parent=39 // pred_region
          %266 = dma.done %s259, 28672
        $region44: #{tpu_custom_call.1} parent=39 // pred_fallthru
          _
        // Predicated region
        $region45: #{tpu_custom_call.1} parent=39 // pred_check
          %p267 = pneg %p66
        $region46: #{tpu_custom_call.1} parent=39 // pred_check_branch
          %269 = sbr.rel (%p267) target = $region48
        $region47: #{tpu_custom_call.1} parent=39 // pred_region
          %270 = dma.done [#allocation6], 12544
        $region48: #{tpu_custom_call.1} parent=39 // pred_fallthru
          _
        // Predicated region
        $region49: #{tpu_custom_call.1} parent=39 // pred_check
          %p271 = pneg %p87
        $region50: #{tpu_custom_call.1} parent=39 // pred_check_branch
          %273 = sbr.rel (%p271) target = $region52
        $region51: #{tpu_custom_call.1} parent=39 // pred_region
          %274 = dma.done [#allocation6], 32
        $region52: #{tpu_custom_call.1} parent=39 // pred_fallthru
          _
        // Predicated region
        $region53: #{tpu_custom_call.1} parent=39 // pred_check
          %p275 = pneg %p108
        $region54: #{tpu_custom_call.1} parent=39 // pred_check_branch
          %277 = sbr.rel (%p275) target = $region56
        $region55: #{tpu_custom_call.1} parent=39 // pred_region
          %278 = dma.done [#allocation9], 2048
        $region56: #{tpu_custom_call.1} parent=39 // pred_fallthru
          _
        // Predicated region
        $region57: #{tpu_custom_call.1} parent=39 // pred_check
          %p279 = pneg %p129
        $region58: #{tpu_custom_call.1} parent=39 // pred_check_branch
          %281 = sbr.rel (%p279) target = $region60
        $region59: #{tpu_custom_call.1} parent=39 // pred_region
          %282 = dma.done [#allocation9], 16
        $region60: #{tpu_custom_call.1} parent=39 // pred_fallthru
          _
        %s283 = sand.u32 %s32, 1
        %s284 = scalar_lea.sflag [#allocation3], %s283
        %s285 = sand.u32 %s32, 1
        %s286 = smul.addr %s285, 1792
        %s287 = scalar_lea.vmem [#allocation2], %s286
        %p288 = pneg %p45
        %p289 = pneg %p42
        %p290 = pneg %p66
        %p291 = pneg %p63
        %p292 = pneg %p87
        %p293 = pneg %p84
        %p294 = pneg %p108
        %p295 = pneg %p105
        %p296 = pneg %p129
        %p297 = pneg %p126
        %p298 = pneg %p155
        %p299 = pneg %p152
        %s300 = sand.u32 %s142, 1
        %s301 = scalar_lea.sflag [#allocation4], %s300
        %s302 = sand.u32 %s142, 1
        %s303 = smul.addr %s302, 256
        %s304 = scalar_lea.vmem [#allocation11], %s303
        %s305 = smul.u32 32, %s24
        %s306 = ssub.s32 38, %s305
        %p307 = scmp.lt.s32.totalorder %s306, 32
        %s308 = scalar_select %p307, %s306, 32
        %s309 = smul.u32 128, %s308
        %s310 = smul.u32 %s309, 7
        %s311 = smul.u32 32, %s24
        %s312 = ssub.s32 38, %s311
        %p313 = scmp.lt.s32.totalorder %s312, 32
        %s314 = scalar_select %p313, %s312, 32
        %s315 = smul.u32 128, %s314
        %v317 = vld [vmem:[%s262] sm:$0xff]
        %v318 = vld [vmem:[%s262 + $0x8] sm:$0xff]
        %v319 = vld [vmem:[%s262 + $0x10] sm:$0xff]
        %v320 = vld [vmem:[%s262 + $0x18] sm:$0xff]
        %v321 = vld [vmem:[%s262 + $0x20] sm:$0xff]
        %v322 = vld [vmem:[%s262 + $0x28] sm:$0xff]
        %v323 = vld [vmem:[%s262 + $0x30] sm:$0xff]
        %v324 = vld [vmem:[%s262 + $0x38] sm:$0xff]
        %v325 = vld [vmem:[%s262 + $0x40] sm:$0xff]
        %v326 = vld [vmem:[%s262 + $0x48] sm:$0xff]
        %v327 = vld [vmem:[%s262 + $0x50] sm:$0xff]
        %v328 = vld [vmem:[%s262 + $0x58] sm:$0xff]
        %v329 = vld [vmem:[%s262 + $0x60] sm:$0xff]
        %v330 = vld [vmem:[%s262 + $0x68] sm:$0xff]
        %v331 = vld [vmem:[%s262 + $0x70] sm:$0xff]
        %v332 = vld [vmem:[%s262 + $0x78] sm:$0xff]
        %v333 = vld [vmem:[%s262 + $0x80] sm:$0xff]
        %v334 = vld [vmem:[%s262 + $0x88] sm:$0xff]
        %v335 = vld [vmem:[%s262 + $0x90] sm:$0xff]
        %v336 = vld [vmem:[%s262 + $0x98] sm:$0xff]
        %v337 = vld [vmem:[%s262 + $0xa0] sm:$0xff]
        %v338 = vld [vmem:[%s262 + $0xa8] sm:$0xff]
        %v339 = vld [vmem:[%s262 + $0xb0] sm:$0xff]
        %v340 = vld [vmem:[%s262 + $0xb8] sm:$0xff]
        %v341 = vld [vmem:[%s262 + $0xc0] sm:$0xff]
        %v342 = vld [vmem:[%s262 + $0xc8] sm:$0xff]
        %v343 = vld [vmem:[%s262 + $0xd0] sm:$0xff]
        %v344 = vld [vmem:[%s262 + $0xd8] sm:$0xff]
        %v345 = vld [vmem:[%s262 + $0xe0] sm:$0xff]
        %v346 = vld [vmem:[%s262 + $0xe8] sm:$0xff]
        %v347 = vld [vmem:[%s262 + $0xf0] sm:$0xff]
        %v348 = vld [vmem:[%s262 + $0xf8] sm:$0xff]
        %v349 = vld [vmem:[%s262 + $0x100] sm:$0xff]
        %v350 = vld [vmem:[%s262 + $0x108] sm:$0xff]
        %v351 = vld [vmem:[%s262 + $0x110] sm:$0xff]
        %v352 = vld [vmem:[%s262 + $0x118] sm:$0xff]
        %v353 = vld [vmem:[%s262 + $0x120] sm:$0xff]
        %v354 = vld [vmem:[%s262 + $0x128] sm:$0xff]
        %v355 = vld [vmem:[%s262 + $0x130] sm:$0xff]
        %v356 = vld [vmem:[%s262 + $0x138] sm:$0xff]
        %v357 = vld [vmem:[%s262 + $0x140] sm:$0xff]
        %v358 = vld [vmem:[%s262 + $0x148] sm:$0xff]
        %v359 = vld [vmem:[%s262 + $0x150] sm:$0xff]
        %v360 = vld [vmem:[%s262 + $0x158] sm:$0xff]
        %v361 = vld [vmem:[%s262 + $0x160] sm:$0xff]
        %v362 = vld [vmem:[%s262 + $0x168] sm:$0xff]
        %v363 = vld [vmem:[%s262 + $0x170] sm:$0xff]
        %v364 = vld [vmem:[%s262 + $0x178] sm:$0xff]
        %v365 = vld [vmem:[%s262 + $0x180] sm:$0xff]
        %v366 = vld [vmem:[%s262 + $0x188] sm:$0xff]
        %v367 = vld [vmem:[%s262 + $0x190] sm:$0xff]
        %v368 = vld [vmem:[%s262 + $0x198] sm:$0xff]
        %v369 = vld [vmem:[%s262 + $0x1a0] sm:$0xff]
        %v370 = vld [vmem:[%s262 + $0x1a8] sm:$0xff]
        %v371 = vld [vmem:[%s262 + $0x1b0] sm:$0xff]
        %v372 = vld [vmem:[%s262 + $0x1b8] sm:$0xff]
        %v373 = vld [vmem:[%s262 + $0x1c0] sm:$0xff]
        %v374 = vld [vmem:[%s262 + $0x1c8] sm:$0xff]
        %v375 = vld [vmem:[%s262 + $0x1d0] sm:$0xff]
        %v376 = vld [vmem:[%s262 + $0x1d8] sm:$0xff]
        %v377 = vld [vmem:[%s262 + $0x1e0] sm:$0xff]
        %v378 = vld [vmem:[%s262 + $0x1e8] sm:$0xff]
        %v379 = vld [vmem:[%s262 + $0x1f0] sm:$0xff]
        %v380 = vld [vmem:[%s262 + $0x1f8] sm:$0xff]
        %v381 = vld [vmem:[%s262 + $0x200] sm:$0xff]
        %v382 = vld [vmem:[%s262 + $0x208] sm:$0xff]
        %v383 = vld [vmem:[%s262 + $0x210] sm:$0xff]
        %v384 = vld [vmem:[%s262 + $0x218] sm:$0xff]
        %v385 = vld [vmem:[%s262 + $0x220] sm:$0xff]
        %v386 = vld [vmem:[%s262 + $0x228] sm:$0xff]
        %v387 = vld [vmem:[%s262 + $0x230] sm:$0xff]
        %v388 = vld [vmem:[%s262 + $0x238] sm:$0xff]
        %v389 = vld [vmem:[%s262 + $0x240] sm:$0xff]
        %v390 = vld [vmem:[%s262 + $0x248] sm:$0xff]
        %v391 = vld [vmem:[%s262 + $0x250] sm:$0xff]
        %v392 = vld [vmem:[%s262 + $0x258] sm:$0xff]
        %v393 = vld [vmem:[%s262 + $0x260] sm:$0xff]
        %v394 = vld [vmem:[%s262 + $0x268] sm:$0xff]
        %v395 = vld [vmem:[%s262 + $0x270] sm:$0xff]
        %v396 = vld [vmem:[%s262 + $0x278] sm:$0xff]
        %v397 = vld [vmem:[%s262 + $0x280] sm:$0xff]
        %v398 = vld [vmem:[%s262 + $0x288] sm:$0xff]
        %v399 = vld [vmem:[%s262 + $0x290] sm:$0xff]
        %v400 = vld [vmem:[%s262 + $0x298] sm:$0xff]
        %v401 = vld [vmem:[%s262 + $0x2a0] sm:$0xff]
        %v402 = vld [vmem:[%s262 + $0x2a8] sm:$0xff]
        %v403 = vld [vmem:[%s262 + $0x2b0] sm:$0xff]
        %v404 = vld [vmem:[%s262 + $0x2b8] sm:$0xff]
        %v405 = vld [vmem:[%s262 + $0x2c0] sm:$0xff]
        %v406 = vld [vmem:[%s262 + $0x2c8] sm:$0xff]
        %v407 = vld [vmem:[%s262 + $0x2d0] sm:$0xff]
        %v408 = vld [vmem:[%s262 + $0x2d8] sm:$0xff]
        %v409 = vld [vmem:[%s262 + $0x2e0] sm:$0xff]
        %v410 = vld [vmem:[%s262 + $0x2e8] sm:$0xff]
        %v411 = vld [vmem:[%s262 + $0x2f0] sm:$0xff]
        %v412 = vld [vmem:[%s262 + $0x2f8] sm:$0xff]
        %v413 = vld [vmem:[%s262 + $0x300] sm:$0xff]
        %v414 = vld [vmem:[%s262 + $0x308] sm:$0xff]
        %v415 = vld [vmem:[%s262 + $0x310] sm:$0xff]
        %v416 = vld [vmem:[%s262 + $0x318] sm:$0xff]
        %v417 = vld [vmem:[%s262 + $0x320] sm:$0xff]
        %v418 = vld [vmem:[%s262 + $0x328] sm:$0xff]
        %v419 = vld [vmem:[%s262 + $0x330] sm:$0xff]
        %v420 = vld [vmem:[%s262 + $0x338] sm:$0xff]
        %v421 = vld [vmem:[%s262 + $0x340] sm:$0xff]
        %v422 = vld [vmem:[%s262 + $0x348] sm:$0xff]
        %v423 = vld [vmem:[%s262 + $0x350] sm:$0xff]
        %v424 = vld [vmem:[%s262 + $0x358] sm:$0xff]
        %v425 = vld [vmem:[%s262 + $0x360] sm:$0xff]
        %v426 = vld [vmem:[%s262 + $0x368] sm:$0xff]
        %v427 = vld [vmem:[%s262 + $0x370] sm:$0xff]
        %v428 = vld [vmem:[%s262 + $0x378] sm:$0xff]
        %v429 = vld [vmem:[%s262 + $0x380] sm:$0xff]
        %v430 = vld [vmem:[%s262 + $0x388] sm:$0xff]
        %v431 = vld [vmem:[%s262 + $0x390] sm:$0xff]
        %v432 = vld [vmem:[%s262 + $0x398] sm:$0xff]
        %v433 = vld [vmem:[%s262 + $0x3a0] sm:$0xff]
        %v434 = vld [vmem:[%s262 + $0x3a8] sm:$0xff]
        %v435 = vld [vmem:[%s262 + $0x3b0] sm:$0xff]
        %v436 = vld [vmem:[%s262 + $0x3b8] sm:$0xff]
        %v437 = vld [vmem:[%s262 + $0x3c0] sm:$0xff]
        %v438 = vld [vmem:[%s262 + $0x3c8] sm:$0xff]
        %v439 = vld [vmem:[%s262 + $0x3d0] sm:$0xff]
        %v440 = vld [vmem:[%s262 + $0x3d8] sm:$0xff]
        %v441 = vld [vmem:[%s262 + $0x3e0] sm:$0xff]
        %v442 = vld [vmem:[%s262 + $0x3e8] sm:$0xff]
        %v443 = vld [vmem:[%s262 + $0x3f0] sm:$0xff]
        %v444 = vld [vmem:[%s262 + $0x3f8] sm:$0xff]
        %v445 = vld [vmem:[%s262 + $0x400] sm:$0xff]
        %v446 = vld [vmem:[%s262 + $0x408] sm:$0xff]
        %v447 = vld [vmem:[%s262 + $0x410] sm:$0xff]
        %v448 = vld [vmem:[%s262 + $0x418] sm:$0xff]
        %v449 = vld [vmem:[%s262 + $0x420] sm:$0xff]
        %v450 = vld [vmem:[%s262 + $0x428] sm:$0xff]
        %v451 = vld [vmem:[%s262 + $0x430] sm:$0xff]
        %v452 = vld [vmem:[%s262 + $0x438] sm:$0xff]
        %v453 = vld [vmem:[%s262 + $0x440] sm:$0xff]
        %v454 = vld [vmem:[%s262 + $0x448] sm:$0xff]
        %v455 = vld [vmem:[%s262 + $0x450] sm:$0xff]
        %v456 = vld [vmem:[%s262 + $0x458] sm:$0xff]
        %v457 = vld [vmem:[%s262 + $0x460] sm:$0xff]
        %v458 = vld [vmem:[%s262 + $0x468] sm:$0xff]
        %v459 = vld [vmem:[%s262 + $0x470] sm:$0xff]
        %v460 = vld [vmem:[%s262 + $0x478] sm:$0xff]
        %v461 = vld [vmem:[%s262 + $0x480] sm:$0xff]
        %v462 = vld [vmem:[%s262 + $0x488] sm:$0xff]
        %v463 = vld [vmem:[%s262 + $0x490] sm:$0xff]
        %v464 = vld [vmem:[%s262 + $0x498] sm:$0xff]
        %v465 = vld [vmem:[%s262 + $0x4a0] sm:$0xff]
        %v466 = vld [vmem:[%s262 + $0x4a8] sm:$0xff]
        %v467 = vld [vmem:[%s262 + $0x4b0] sm:$0xff]
        %v468 = vld [vmem:[%s262 + $0x4b8] sm:$0xff]
        %v469 = vld [vmem:[%s262 + $0x4c0] sm:$0xff]
        %v470 = vld [vmem:[%s262 + $0x4c8] sm:$0xff]
        %v471 = vld [vmem:[%s262 + $0x4d0] sm:$0xff]
        %v472 = vld [vmem:[%s262 + $0x4d8] sm:$0xff]
        %v473 = vld [vmem:[%s262 + $0x4e0] sm:$0xff]
        %v474 = vld [vmem:[%s262 + $0x4e8] sm:$0xff]
        %v475 = vld [vmem:[%s262 + $0x4f0] sm:$0xff]
        %v476 = vld [vmem:[%s262 + $0x4f8] sm:$0xff]
        %v477 = vld [vmem:[%s262 + $0x500] sm:$0xff]
        %v478 = vld [vmem:[%s262 + $0x508] sm:$0xff]
        %v479 = vld [vmem:[%s262 + $0x510] sm:$0xff]
        %v480 = vld [vmem:[%s262 + $0x518] sm:$0xff]
        %v481 = vld [vmem:[%s262 + $0x520] sm:$0xff]
        %v482 = vld [vmem:[%s262 + $0x528] sm:$0xff]
        %v483 = vld [vmem:[%s262 + $0x530] sm:$0xff]
        %v484 = vld [vmem:[%s262 + $0x538] sm:$0xff]
        %v485 = vld [vmem:[%s262 + $0x540] sm:$0xff]
        %v486 = vld [vmem:[%s262 + $0x548] sm:$0xff]
        %v487 = vld [vmem:[%s262 + $0x550] sm:$0xff]
        %v488 = vld [vmem:[%s262 + $0x558] sm:$0xff]
        %v489 = vld [vmem:[%s262 + $0x560] sm:$0xff]
        %v490 = vld [vmem:[%s262 + $0x568] sm:$0xff]
        %v491 = vld [vmem:[%s262 + $0x570] sm:$0xff]
        %v492 = vld [vmem:[%s262 + $0x578] sm:$0xff]
        %v493 = vld [vmem:[%s262 + $0x580] sm:$0xff]
        %v494 = vld [vmem:[%s262 + $0x588] sm:$0xff]
        %v495 = vld [vmem:[%s262 + $0x590] sm:$0xff]
        %v496 = vld [vmem:[%s262 + $0x598] sm:$0xff]
        %v497 = vld [vmem:[%s262 + $0x5a0] sm:$0xff]
        %v498 = vld [vmem:[%s262 + $0x5a8] sm:$0xff]
        %v499 = vld [vmem:[%s262 + $0x5b0] sm:$0xff]
        %v500 = vld [vmem:[%s262 + $0x5b8] sm:$0xff]
        %v501 = vld [vmem:[%s262 + $0x5c0] sm:$0xff]
        %v502 = vld [vmem:[%s262 + $0x5c8] sm:$0xff]
        %v503 = vld [vmem:[%s262 + $0x5d0] sm:$0xff]
        %v504 = vld [vmem:[%s262 + $0x5d8] sm:$0xff]
        %v505 = vld [vmem:[%s262 + $0x5e0] sm:$0xff]
        %v506 = vld [vmem:[%s262 + $0x5e8] sm:$0xff]
        %v507 = vld [vmem:[%s262 + $0x5f0] sm:$0xff]
        %v508 = vld [vmem:[%s262 + $0x5f8] sm:$0xff]
        %v509 = vld [vmem:[%s262 + $0x600] sm:$0xff]
        %v510 = vld [vmem:[%s262 + $0x608] sm:$0xff]
        %v511 = vld [vmem:[%s262 + $0x610] sm:$0xff]
        %v512 = vld [vmem:[%s262 + $0x618] sm:$0xff]
        %v513 = vld [vmem:[%s262 + $0x620] sm:$0xff]
        %v514 = vld [vmem:[%s262 + $0x628] sm:$0xff]
        %v515 = vld [vmem:[%s262 + $0x630] sm:$0xff]
        %v516 = vld [vmem:[%s262 + $0x638] sm:$0xff]
        %v517 = vld [vmem:[%s262 + $0x640] sm:$0xff]
        %v518 = vld [vmem:[%s262 + $0x648] sm:$0xff]
        %v519 = vld [vmem:[%s262 + $0x650] sm:$0xff]
        %v520 = vld [vmem:[%s262 + $0x658] sm:$0xff]
        %v521 = vld [vmem:[%s262 + $0x660] sm:$0xff]
        %v522 = vld [vmem:[%s262 + $0x668] sm:$0xff]
        %v523 = vld [vmem:[%s262 + $0x670] sm:$0xff]
        %v524 = vld [vmem:[%s262 + $0x678] sm:$0xff]
        %v525 = vld [vmem:[%s262 + $0x680] sm:$0xff]
        %v526 = vld [vmem:[%s262 + $0x688] sm:$0xff]
        %v527 = vld [vmem:[%s262 + $0x690] sm:$0xff]
        %v528 = vld [vmem:[%s262 + $0x698] sm:$0xff]
        %v529 = vld [vmem:[%s262 + $0x6a0] sm:$0xff]
        %v530 = vld [vmem:[%s262 + $0x6a8] sm:$0xff]
        %v531 = vld [vmem:[%s262 + $0x6b0] sm:$0xff]
        %v532 = vld [vmem:[%s262 + $0x6b8] sm:$0xff]
        %v533 = vld [vmem:[%s262 + $0x6c0] sm:$0xff]
        %v534 = vld [vmem:[%s262 + $0x6c8] sm:$0xff]
        %v535 = vld [vmem:[%s262 + $0x6d0] sm:$0xff]
        %v536 = vld [vmem:[%s262 + $0x6d8] sm:$0xff]
        %v537 = vld [vmem:[%s262 + $0x6e0] sm:$0xff]
        %v538 = vld [vmem:[%s262 + $0x6e8] sm:$0xff]
        %v539 = vld [vmem:[%s262 + $0x6f0] sm:$0xff]
        %v540 = vld [vmem:[%s262 + $0x6f8] sm:$0xff]
        %v541 = vpack.c.bf16 %v324, %v317
        %v542 = vpack.c.bf16 %v325, %v318
        %v543 = vpack.c.bf16 %v326, %v319
        %v544 = vpack.c.bf16 %v327, %v320
        %v545 = vpack.c.bf16 %v328, %v321
        %v546 = vpack.c.bf16 %v329, %v322
        %v547 = vpack.c.bf16 %v330, %v323
        %v548 = vpack.c.bf16 %v338, %v331
        %v549 = vpack.c.bf16 %v339, %v332
        %v550 = vpack.c.bf16 %v340, %v333
        %v551 = vpack.c.bf16 %v341, %v334
        %v552 = vpack.c.bf16 %v342, %v335
        %v553 = vpack.c.bf16 %v343, %v336
        %v554 = vpack.c.bf16 %v344, %v337
        %v555 = vpack.c.bf16 %v352, %v345
        %v556 = vpack.c.bf16 %v353, %v346
        %v557 = vpack.c.bf16 %v354, %v347
        %v558 = vpack.c.bf16 %v355, %v348
        %v559 = vpack.c.bf16 %v356, %v349
        %v560 = vpack.c.bf16 %v357, %v350
        %v561 = vpack.c.bf16 %v358, %v351
        %v562 = vpack.c.bf16 %v366, %v359
        %v563 = vpack.c.bf16 %v367, %v360
        %v564 = vpack.c.bf16 %v368, %v361
        %v565 = vpack.c.bf16 %v369, %v362
        %v566 = vpack.c.bf16 %v370, %v363
        %v567 = vpack.c.bf16 %v371, %v364
        %v568 = vpack.c.bf16 %v372, %v365
        %v569 = vpack.c.bf16 %v380, %v373
        %v570 = vpack.c.bf16 %v381, %v374
        %v571 = vpack.c.bf16 %v382, %v375
        %v572 = vpack.c.bf16 %v383, %v376
        %v573 = vpack.c.bf16 %v384, %v377
        %v574 = vpack.c.bf16 %v385, %v378
        %v575 = vpack.c.bf16 %v386, %v379
        %v576 = vpack.c.bf16 %v394, %v387
        %v577 = vpack.c.bf16 %v395, %v388
        %v578 = vpack.c.bf16 %v396, %v389
        %v579 = vpack.c.bf16 %v397, %v390
        %v580 = vpack.c.bf16 %v398, %v391
        %v581 = vpack.c.bf16 %v399, %v392
        %v582 = vpack.c.bf16 %v400, %v393
        %v583 = vpack.c.bf16 %v408, %v401
        %v584 = vpack.c.bf16 %v409, %v402
        %v585 = vpack.c.bf16 %v410, %v403
        %v586 = vpack.c.bf16 %v411, %v404
        %v587 = vpack.c.bf16 %v412, %v405
        %v588 = vpack.c.bf16 %v413, %v406
        %v589 = vpack.c.bf16 %v414, %v407
        %v590 = vpack.c.bf16 %v422, %v415
        %v591 = vpack.c.bf16 %v423, %v416
        %v592 = vpack.c.bf16 %v424, %v417
        %v593 = vpack.c.bf16 %v425, %v418
        %v594 = vpack.c.bf16 %v426, %v419
        %v595 = vpack.c.bf16 %v427, %v420
        %v596 = vpack.c.bf16 %v428, %v421
        %v597 = vpack.c.bf16 %v436, %v429
        %v598 = vpack.c.bf16 %v437, %v430
        %v599 = vpack.c.bf16 %v438, %v431
        %v600 = vpack.c.bf16 %v439, %v432
        %v601 = vpack.c.bf16 %v440, %v433
        %v602 = vpack.c.bf16 %v441, %v434
        %v603 = vpack.c.bf16 %v442, %v435
        %v604 = vpack.c.bf16 %v450, %v443
        %v605 = vpack.c.bf16 %v451, %v444
        %v606 = vpack.c.bf16 %v452, %v445
        %v607 = vpack.c.bf16 %v453, %v446
        %v608 = vpack.c.bf16 %v454, %v447
        %v609 = vpack.c.bf16 %v455, %v448
        %v610 = vpack.c.bf16 %v456, %v449
        %v611 = vpack.c.bf16 %v464, %v457
        %v612 = vpack.c.bf16 %v465, %v458
        %v613 = vpack.c.bf16 %v466, %v459
        %v614 = vpack.c.bf16 %v467, %v460
        %v615 = vpack.c.bf16 %v468, %v461
        %v616 = vpack.c.bf16 %v469, %v462
        %v617 = vpack.c.bf16 %v470, %v463
        %v618 = vpack.c.bf16 %v478, %v471
        %v619 = vpack.c.bf16 %v479, %v472
        %v620 = vpack.c.bf16 %v480, %v473
        %v621 = vpack.c.bf16 %v481, %v474
        %v622 = vpack.c.bf16 %v482, %v475
        %v623 = vpack.c.bf16 %v483, %v476
        %v624 = vpack.c.bf16 %v484, %v477
        %v625 = vpack.c.bf16 %v492, %v485
        %v626 = vpack.c.bf16 %v493, %v486
        %v627 = vpack.c.bf16 %v494, %v487
        %v628 = vpack.c.bf16 %v495, %v488
        %v629 = vpack.c.bf16 %v496, %v489
        %v630 = vpack.c.bf16 %v497, %v490
        %v631 = vpack.c.bf16 %v498, %v491
        %v632 = vpack.c.bf16 %v506, %v499
        %v633 = vpack.c.bf16 %v507, %v500
        %v634 = vpack.c.bf16 %v508, %v501
        %v635 = vpack.c.bf16 %v509, %v502
        %v636 = vpack.c.bf16 %v510, %v503
        %v637 = vpack.c.bf16 %v511, %v504
        %v638 = vpack.c.bf16 %v512, %v505
        %v639 = vpack.c.bf16 %v520, %v513
        %v640 = vpack.c.bf16 %v521, %v514
        %v641 = vpack.c.bf16 %v522, %v515
        %v642 = vpack.c.bf16 %v523, %v516
        %v643 = vpack.c.bf16 %v524, %v517
        %v644 = vpack.c.bf16 %v525, %v518
        %v645 = vpack.c.bf16 %v526, %v519
        %v646 = vpack.c.bf16 %v534, %v527
        %v647 = vpack.c.bf16 %v535, %v528
        %v648 = vpack.c.bf16 %v536, %v529
        %v649 = vpack.c.bf16 %v537, %v530
        %v650 = vpack.c.bf16 %v538, %v531
        %v651 = vpack.c.bf16 %v539, %v532
        %v652 = vpack.c.bf16 %v540, %v533
        %v653 = vld [vmem:[#allocation5] sm:$0xff]
        %v654 = vld [vmem:[#allocation5 + $0x8] sm:$0xff]
        %v655 = vld [vmem:[#allocation5 + $0x10] sm:$0xff]
        %v656 = vld [vmem:[#allocation5 + $0x18] sm:$0xff]
        %v657 = vld [vmem:[#allocation5 + $0x20] sm:$0xff]
        %v658 = vld [vmem:[#allocation5 + $0x28] sm:$0xff]
        %v659 = vld [vmem:[#allocation5 + $0x30] sm:$0xff]
        %v660 = vld [vmem:[#allocation5 + $0x38] sm:$0xff]
        %v661 = vld [vmem:[#allocation5 + $0x40] sm:$0xff]
        %v662 = vld [vmem:[#allocation5 + $0x48] sm:$0xff]
        %v663 = vld [vmem:[#allocation5 + $0x50] sm:$0xff]
        %v664 = vld [vmem:[#allocation5 + $0x58] sm:$0xff]
        %v665 = vld [vmem:[#allocation5 + $0x60] sm:$0xff]
        %v666 = vld [vmem:[#allocation5 + $0x68] sm:$0xff]
        %v667 = vld [vmem:[#allocation5 + $0x70] sm:$0xff]
        %v668 = vld [vmem:[#allocation5 + $0x78] sm:$0xff]
        %v669 = vld [vmem:[#allocation5 + $0x80] sm:$0xff]
        %v670 = vld [vmem:[#allocation5 + $0x88] sm:$0xff]
        %v671 = vld [vmem:[#allocation5 + $0x90] sm:$0xff]
        %v672 = vld [vmem:[#allocation5 + $0x98] sm:$0xff]
        %v673 = vld [vmem:[#allocation5 + $0xa0] sm:$0xff]
        %v674 = vld [vmem:[#allocation5 + $0xa8] sm:$0xff]
        %v675 = vld [vmem:[#allocation5 + $0xb0] sm:$0xff]
        %v676 = vld [vmem:[#allocation5 + $0xb8] sm:$0xff]
        %v677 = vld [vmem:[#allocation5 + $0xc0] sm:$0xff]
        %v678 = vld [vmem:[#allocation5 + $0xc8] sm:$0xff]
        %v679 = vld [vmem:[#allocation5 + $0xd0] sm:$0xff]
        %v680 = vld [vmem:[#allocation5 + $0xd8] sm:$0xff]
        %v681 = vld [vmem:[#allocation5 + $0xe0] sm:$0xff]
        %v682 = vld [vmem:[#allocation5 + $0xe8] sm:$0xff]
        %v683 = vld [vmem:[#allocation5 + $0xf0] sm:$0xff]
        %v684 = vld [vmem:[#allocation5 + $0xf8] sm:$0xff]
        %v685 = vld [vmem:[#allocation5 + $0x100] sm:$0xff]
        %v686 = vld [vmem:[#allocation5 + $0x108] sm:$0xff]
        %v687 = vld [vmem:[#allocation5 + $0x110] sm:$0xff]
        %v688 = vld [vmem:[#allocation5 + $0x118] sm:$0xff]
        %v689 = vld [vmem:[#allocation5 + $0x120] sm:$0xff]
        %v690 = vld [vmem:[#allocation5 + $0x128] sm:$0xff]
        %v691 = vld [vmem:[#allocation5 + $0x130] sm:$0xff]
        %v692 = vld [vmem:[#allocation5 + $0x138] sm:$0xff]
        %v693 = vld [vmem:[#allocation5 + $0x140] sm:$0xff]
        %v694 = vld [vmem:[#allocation5 + $0x148] sm:$0xff]
        %v695 = vld [vmem:[#allocation5 + $0x150] sm:$0xff]
        %v696 = vld [vmem:[#allocation5 + $0x158] sm:$0xff]
        %v697 = vld [vmem:[#allocation5 + $0x160] sm:$0xff]
        %v698 = vld [vmem:[#allocation5 + $0x168] sm:$0xff]
        %v699 = vld [vmem:[#allocation5 + $0x170] sm:$0xff]
        %v700 = vld [vmem:[#allocation5 + $0x178] sm:$0xff]
        %v701 = vld [vmem:[#allocation5 + $0x180] sm:$0xff]
        %v702 = vld [vmem:[#allocation5 + $0x188] sm:$0xff]
        %v703 = vld [vmem:[#allocation5 + $0x190] sm:$0xff]
        %v704 = vld [vmem:[#allocation5 + $0x198] sm:$0xff]
        %v705 = vld [vmem:[#allocation5 + $0x1a0] sm:$0xff]
        %v706 = vld [vmem:[#allocation5 + $0x1a8] sm:$0xff]
        %v707 = vld [vmem:[#allocation5 + $0x1b0] sm:$0xff]
        %v708 = vld [vmem:[#allocation5 + $0x1b8] sm:$0xff]
        %v709 = vld [vmem:[#allocation5 + $0x1c0] sm:$0xff]
        %v710 = vld [vmem:[#allocation5 + $0x1c8] sm:$0xff]
        %v711 = vld [vmem:[#allocation5 + $0x1d0] sm:$0xff]
        %v712 = vld [vmem:[#allocation5 + $0x1d8] sm:$0xff]
        %v713 = vld [vmem:[#allocation5 + $0x1e0] sm:$0xff]
        %v714 = vld [vmem:[#allocation5 + $0x1e8] sm:$0xff]
        %v715 = vld [vmem:[#allocation5 + $0x1f0] sm:$0xff]
        %v716 = vld [vmem:[#allocation5 + $0x1f8] sm:$0xff]
        %v717 = vld [vmem:[#allocation5 + $0x200] sm:$0xff]
        %v718 = vld [vmem:[#allocation5 + $0x208] sm:$0xff]
        %v719 = vld [vmem:[#allocation5 + $0x210] sm:$0xff]
        %v720 = vld [vmem:[#allocation5 + $0x218] sm:$0xff]
        %v721 = vld [vmem:[#allocation5 + $0x220] sm:$0xff]
        %v722 = vld [vmem:[#allocation5 + $0x228] sm:$0xff]
        %v723 = vld [vmem:[#allocation5 + $0x230] sm:$0xff]
        %v724 = vld [vmem:[#allocation5 + $0x238] sm:$0xff]
        %v725 = vld [vmem:[#allocation5 + $0x240] sm:$0xff]
        %v726 = vld [vmem:[#allocation5 + $0x248] sm:$0xff]
        %v727 = vld [vmem:[#allocation5 + $0x250] sm:$0xff]
        %v728 = vld [vmem:[#allocation5 + $0x258] sm:$0xff]
        %v729 = vld [vmem:[#allocation5 + $0x260] sm:$0xff]
        %v730 = vld [vmem:[#allocation5 + $0x268] sm:$0xff]
        %v731 = vld [vmem:[#allocation5 + $0x270] sm:$0xff]
        %v732 = vld [vmem:[#allocation5 + $0x278] sm:$0xff]
        %v733 = vld [vmem:[#allocation5 + $0x280] sm:$0xff]
        %v734 = vld [vmem:[#allocation5 + $0x288] sm:$0xff]
        %v735 = vld [vmem:[#allocation5 + $0x290] sm:$0xff]
        %v736 = vld [vmem:[#allocation5 + $0x298] sm:$0xff]
        %v737 = vld [vmem:[#allocation5 + $0x2a0] sm:$0xff]
        %v738 = vld [vmem:[#allocation5 + $0x2a8] sm:$0xff]
        %v739 = vld [vmem:[#allocation5 + $0x2b0] sm:$0xff]
        %v740 = vld [vmem:[#allocation5 + $0x2b8] sm:$0xff]
        %v741 = vld [vmem:[#allocation5 + $0x2c0] sm:$0xff]
        %v742 = vld [vmem:[#allocation5 + $0x2c8] sm:$0xff]
        %v743 = vld [vmem:[#allocation5 + $0x2d0] sm:$0xff]
        %v744 = vld [vmem:[#allocation5 + $0x2d8] sm:$0xff]
        %v745 = vld [vmem:[#allocation5 + $0x2e0] sm:$0xff]
        %v746 = vld [vmem:[#allocation5 + $0x2e8] sm:$0xff]
        %v747 = vld [vmem:[#allocation5 + $0x2f0] sm:$0xff]
        %v748 = vld [vmem:[#allocation5 + $0x2f8] sm:$0xff]
        %v749 = vld [vmem:[#allocation5 + $0x300] sm:$0xff]
        %v750 = vld [vmem:[#allocation5 + $0x308] sm:$0xff]
        %v751 = vld [vmem:[#allocation7] sm:$0x3]
        %v753 = vlaneseq
        %v754 = vshrl.u32 %v753, 7
        %v755 = vsub.s32 0, %v754
        %v756 = vrot.slane %v751, %v755
        %v757 = vlaneseq
        %v758 = vshrl.u32 %v757, 7
        %v759 = vsub.s32 1, %v758
        %v760 = vrot.slane %v751, %v759
        %v861 = vunpack.c.l.b16 %v653
        %v862 = vunpack.c.h.b16 %v653
        %v863 = vunpack.c.l.b16 %v654
        %v864 = vunpack.c.h.b16 %v654
        %v865 = vunpack.c.l.b16 %v655
        %v866 = vunpack.c.h.b16 %v655
        %v867 = vunpack.c.l.b16 %v656
        %v868 = vunpack.c.h.b16 %v656
        %v869 = vunpack.c.l.b16 %v657
        %v870 = vunpack.c.h.b16 %v657
        %v871 = vunpack.c.l.b16 %v658
        %v872 = vunpack.c.h.b16 %v658
        %v873 = vunpack.c.l.b16 %v659
        %v874 = vunpack.c.h.b16 %v659
        %v875 = vunpack.c.l.b16 %v660
        %v876 = vunpack.c.h.b16 %v660
        %v877 = vunpack.c.l.b16 %v661
        %v878 = vunpack.c.h.b16 %v661
        %v879 = vunpack.c.l.b16 %v662
        %v880 = vunpack.c.h.b16 %v662
        %v881 = vunpack.c.l.b16 %v663
        %v882 = vunpack.c.h.b16 %v663
        %v883 = vunpack.c.l.b16 %v664
        %v884 = vunpack.c.h.b16 %v664
        %v885 = vunpack.c.l.b16 %v665
        %v886 = vunpack.c.h.b16 %v665
        %v887 = vunpack.c.l.b16 %v666
        %v888 = vunpack.c.h.b16 %v666
        %v889 = vunpack.c.l.b16 %v667
        %v890 = vunpack.c.h.b16 %v667
        %v891 = vunpack.c.l.b16 %v668
        %v892 = vunpack.c.h.b16 %v668
        %v893 = vunpack.c.l.b16 %v669
        %v894 = vunpack.c.h.b16 %v669
        %v895 = vunpack.c.l.b16 %v670
        %v896 = vunpack.c.h.b16 %v670
        %v897 = vunpack.c.l.b16 %v671
        %v898 = vunpack.c.h.b16 %v671
        %v899 = vunpack.c.l.b16 %v672
        %v900 = vunpack.c.h.b16 %v672
        %v901 = vunpack.c.l.b16 %v673
        %v902 = vunpack.c.h.b16 %v673
        %v903 = vunpack.c.l.b16 %v674
        %v904 = vunpack.c.h.b16 %v674
        %v905 = vunpack.c.l.b16 %v675
        %v906 = vunpack.c.h.b16 %v675
        %v907 = vunpack.c.l.b16 %v676
        %v908 = vunpack.c.h.b16 %v676
        %v909 = vunpack.c.l.b16 %v677
        %v910 = vunpack.c.h.b16 %v677
        %v911 = vunpack.c.l.b16 %v678
        %v912 = vunpack.c.h.b16 %v678
        %v913 = vunpack.c.l.b16 %v679
        %v914 = vunpack.c.h.b16 %v679
        %v915 = vunpack.c.l.b16 %v680
        %v916 = vunpack.c.h.b16 %v680
        %v917 = vunpack.c.l.b16 %v681
        %v918 = vunpack.c.h.b16 %v681
        %v919 = vunpack.c.l.b16 %v682
        %v920 = vunpack.c.h.b16 %v682
        %v921 = vunpack.c.l.b16 %v683
        %v922 = vunpack.c.h.b16 %v683
        %v923 = vunpack.c.l.b16 %v684
        %v924 = vunpack.c.h.b16 %v684
        %v925 = vunpack.c.l.b16 %v685
        %v926 = vunpack.c.h.b16 %v685
        %v927 = vunpack.c.l.b16 %v686
        %v928 = vunpack.c.h.b16 %v686
        %v929 = vunpack.c.l.b16 %v687
        %v930 = vunpack.c.h.b16 %v687
        %v931 = vunpack.c.l.b16 %v688
        %v932 = vunpack.c.h.b16 %v688
        %v933 = vunpack.c.l.b16 %v689
        %v934 = vunpack.c.h.b16 %v689
        %v935 = vunpack.c.l.b16 %v690
        %v936 = vunpack.c.h.b16 %v690
        %v937 = vunpack.c.l.b16 %v691
        %v938 = vunpack.c.h.b16 %v691
        %v939 = vunpack.c.l.b16 %v692
        %v940 = vunpack.c.h.b16 %v692
        %v941 = vunpack.c.l.b16 %v693
        %v942 = vunpack.c.h.b16 %v693
        %v943 = vunpack.c.l.b16 %v694
        %v944 = vunpack.c.h.b16 %v694
        %v945 = vunpack.c.l.b16 %v695
        %v946 = vunpack.c.h.b16 %v695
        %v947 = vunpack.c.l.b16 %v696
        %v948 = vunpack.c.h.b16 %v696
        %v949 = vunpack.c.l.b16 %v697
        %v950 = vunpack.c.h.b16 %v697
        %v951 = vunpack.c.l.b16 %v698
        %v952 = vunpack.c.h.b16 %v698
        %v953 = vunpack.c.l.b16 %v699
        %v954 = vunpack.c.h.b16 %v699
        %v955 = vunpack.c.l.b16 %v700
        %v956 = vunpack.c.h.b16 %v700
        %v957 = vunpack.c.l.b16 %v701
        %v958 = vunpack.c.h.b16 %v701
        %v959 = vunpack.c.l.b16 %v702
        %v960 = vunpack.c.h.b16 %v702
        %v961 = vunpack.c.l.b16 %v703
        %v962 = vunpack.c.h.b16 %v703
        %v963 = vunpack.c.l.b16 %v704
        %v964 = vunpack.c.h.b16 %v704
        %v965 = vunpack.c.l.b16 %v705
        %v966 = vunpack.c.h.b16 %v705
        %v967 = vunpack.c.l.b16 %v706
        %v968 = vunpack.c.h.b16 %v706
        %v969 = vunpack.c.l.b16 %v707
        %v970 = vunpack.c.h.b16 %v707
        %v971 = vunpack.c.l.b16 %v708
        %v972 = vunpack.c.h.b16 %v708
        %v973 = vunpack.c.l.b16 %v709
        %v974 = vunpack.c.h.b16 %v709
        %v975 = vunpack.c.l.b16 %v710
        %v976 = vunpack.c.h.b16 %v710
        %v977 = vunpack.c.l.b16 %v711
        %v978 = vunpack.c.h.b16 %v711
        %v979 = vunpack.c.l.b16 %v712
        %v980 = vunpack.c.h.b16 %v712
        %v981 = vunpack.c.l.b16 %v713
        %v982 = vunpack.c.h.b16 %v713
        %v983 = vunpack.c.l.b16 %v714
        %v984 = vunpack.c.h.b16 %v714
        %v985 = vunpack.c.l.b16 %v715
        %v986 = vunpack.c.h.b16 %v715
        %v987 = vunpack.c.l.b16 %v716
        %v988 = vunpack.c.h.b16 %v716
        %v989 = vunpack.c.l.b16 %v717
        %v990 = vunpack.c.h.b16 %v717
        %v991 = vunpack.c.l.b16 %v718
        %v992 = vunpack.c.h.b16 %v718
        %v993 = vunpack.c.l.b16 %v719
        %v994 = vunpack.c.h.b16 %v719
        %v995 = vunpack.c.l.b16 %v720
        %v996 = vunpack.c.h.b16 %v720
        %v997 = vunpack.c.l.b16 %v721
        %v998 = vunpack.c.h.b16 %v721
        %v999 = vunpack.c.l.b16 %v722
        %v1000 = vunpack.c.h.b16 %v722
        %v1001 = vunpack.c.l.b16 %v723
        %v1002 = vunpack.c.h.b16 %v723
        %v1003 = vunpack.c.l.b16 %v724
        %v1004 = vunpack.c.h.b16 %v724
        %v1005 = vunpack.c.l.b16 %v725
        %v1006 = vunpack.c.h.b16 %v725
        %v1007 = vunpack.c.l.b16 %v726
        %v1008 = vunpack.c.h.b16 %v726
        %v1009 = vunpack.c.l.b16 %v727
        %v1010 = vunpack.c.h.b16 %v727
        %v1011 = vunpack.c.l.b16 %v728
        %v1012 = vunpack.c.h.b16 %v728
        %v1013 = vunpack.c.l.b16 %v729
        %v1014 = vunpack.c.h.b16 %v729
        %v1015 = vunpack.c.l.b16 %v730
        %v1016 = vunpack.c.h.b16 %v730
        %v1017 = vunpack.c.l.b16 %v731
        %v1018 = vunpack.c.h.b16 %v731
        %v1019 = vunpack.c.l.b16 %v732
        %v1020 = vunpack.c.h.b16 %v732
        %v1021 = vunpack.c.l.b16 %v733
        %v1022 = vunpack.c.h.b16 %v733
        %v1023 = vunpack.c.l.b16 %v734
        %v1024 = vunpack.c.h.b16 %v734
        %v1025 = vunpack.c.l.b16 %v735
        %v1026 = vunpack.c.h.b16 %v735
        %v1027 = vunpack.c.l.b16 %v736
        %v1028 = vunpack.c.h.b16 %v736
        %v1029 = vunpack.c.l.b16 %v737
        %v1030 = vunpack.c.h.b16 %v737
        %v1031 = vunpack.c.l.b16 %v738
        %v1032 = vunpack.c.h.b16 %v738
        %v1033 = vunpack.c.l.b16 %v739
        %v1034 = vunpack.c.h.b16 %v739
        %v1035 = vunpack.c.l.b16 %v740
        %v1036 = vunpack.c.h.b16 %v740
        %v1037 = vunpack.c.l.b16 %v741
        %v1038 = vunpack.c.h.b16 %v741
        %v1039 = vunpack.c.l.b16 %v742
        %v1040 = vunpack.c.h.b16 %v742
        %v1041 = vunpack.c.l.b16 %v743
        %v1042 = vunpack.c.h.b16 %v743
        %v1043 = vunpack.c.l.b16 %v744
        %v1044 = vunpack.c.h.b16 %v744
        %v1045 = vunpack.c.l.b16 %v745
        %v1046 = vunpack.c.h.b16 %v745
        %v1047 = vunpack.c.l.b16 %v746
        %v1048 = vunpack.c.h.b16 %v746
        %v1049 = vunpack.c.l.b16 %v747
        %v1050 = vunpack.c.h.b16 %v747
        %v1051 = vunpack.c.l.b16 %v748
        %v1052 = vunpack.c.h.b16 %v748
        %v1053 = vunpack.c.l.b16 %v749
        %v1054 = vunpack.c.h.b16 %v749
        %v1055 = vunpack.c.l.b16 %v750
        %v1056 = vunpack.c.h.b16 %v750
        %v1057 = vpack.c.b16 %v863, %v861
        %v1058 = vpack.c.b16 %v864, %v862
        %v1059 = vpack.c.b16 %v867, %v865
        %v1060 = vpack.c.b16 %v868, %v866
        %v1061 = vpack.c.b16 %v871, %v869
        %v1062 = vpack.c.b16 %v872, %v870
        %v1063 = vpack.c.b16 %v875, %v873
        %v1064 = vpack.c.b16 %v876, %v874
        %v1065 = vpack.c.b16 %v879, %v877
        %v1066 = vpack.c.b16 %v880, %v878
        %v1067 = vpack.c.b16 %v883, %v881
        %v1068 = vpack.c.b16 %v884, %v882
        %v1069 = vpack.c.b16 %v887, %v885
        %v1070 = vpack.c.b16 %v888, %v886
        %v1071 = vpack.c.b16 %v891, %v889
        %v1072 = vpack.c.b16 %v892, %v890
        %v1073 = vpack.c.b16 %v895, %v893
        %v1074 = vpack.c.b16 %v896, %v894
        %v1075 = vpack.c.b16 %v899, %v897
        %v1076 = vpack.c.b16 %v900, %v898
        %v1077 = vpack.c.b16 %v903, %v901
        %v1078 = vpack.c.b16 %v904, %v902
        %v1079 = vpack.c.b16 %v907, %v905
        %v1080 = vpack.c.b16 %v908, %v906
        %v1081 = vpack.c.b16 %v911, %v909
        %v1082 = vpack.c.b16 %v912, %v910
        %v1083 = vpack.c.b16 %v915, %v913
        %v1084 = vpack.c.b16 %v916, %v914
        %v1085 = vpack.c.b16 %v919, %v917
        %v1086 = vpack.c.b16 %v920, %v918
        %v1087 = vpack.c.b16 %v923, %v921
        %v1088 = vpack.c.b16 %v924, %v922
        %v1089 = vpack.c.b16 %v927, %v925
        %v1090 = vpack.c.b16 %v928, %v926
        %v1091 = vpack.c.b16 %v931, %v929
        %v1092 = vpack.c.b16 %v932, %v930
        %v1093 = vpack.c.b16 %v935, %v933
        %v1094 = vpack.c.b16 %v936, %v934
        %v1095 = vpack.c.b16 %v939, %v937
        %v1096 = vpack.c.b16 %v940, %v938
        %v1097 = vpack.c.b16 %v943, %v941
        %v1098 = vpack.c.b16 %v944, %v942
        %v1099 = vpack.c.b16 %v947, %v945
        %v1100 = vpack.c.b16 %v948, %v946
        %v1101 = vpack.c.b16 %v951, %v949
        %v1102 = vpack.c.b16 %v952, %v950
        %v1103 = vpack.c.b16 %v955, %v953
        %v1104 = vpack.c.b16 %v956, %v954
        %v1105 = vpack.c.b16 %v959, %v957
        %v1106 = vpack.c.b16 %v960, %v958
        %v1107 = vpack.c.b16 %v963, %v961
        %v1108 = vpack.c.b16 %v964, %v962
        %v1109 = vpack.c.b16 %v967, %v965
        %v1110 = vpack.c.b16 %v968, %v966
        %v1111 = vpack.c.b16 %v971, %v969
        %v1112 = vpack.c.b16 %v972, %v970
        %v1113 = vpack.c.b16 %v975, %v973
        %v1114 = vpack.c.b16 %v976, %v974
        %v1115 = vpack.c.b16 %v979, %v977
        %v1116 = vpack.c.b16 %v980, %v978
        %v1117 = vpack.c.b16 %v983, %v981
        %v1118 = vpack.c.b16 %v984, %v982
        %v1119 = vpack.c.b16 %v987, %v985
        %v1120 = vpack.c.b16 %v988, %v986
        %v1121 = vpack.c.b16 %v991, %v989
        %v1122 = vpack.c.b16 %v992, %v990
        %v1123 = vpack.c.b16 %v995, %v993
        %v1124 = vpack.c.b16 %v996, %v994
        %v1125 = vpack.c.b16 %v999, %v997
        %v1126 = vpack.c.b16 %v1000, %v998
        %v1127 = vpack.c.b16 %v1003, %v1001
        %v1128 = vpack.c.b16 %v1004, %v1002
        %v1129 = vpack.c.b16 %v1007, %v1005
        %v1130 = vpack.c.b16 %v1008, %v1006
        %v1131 = vpack.c.b16 %v1011, %v1009
        %v1132 = vpack.c.b16 %v1012, %v1010
        %v1133 = vpack.c.b16 %v1015, %v1013
        %v1134 = vpack.c.b16 %v1016, %v1014
        %v1135 = vpack.c.b16 %v1019, %v1017
        %v1136 = vpack.c.b16 %v1020, %v1018
        %v1137 = vpack.c.b16 %v1023, %v1021
        %v1138 = vpack.c.b16 %v1024, %v1022
        %v1139 = vpack.c.b16 %v1027, %v1025
        %v1140 = vpack.c.b16 %v1028, %v1026
        %v1141 = vpack.c.b16 %v1031, %v1029
        %v1142 = vpack.c.b16 %v1032, %v1030
        %v1143 = vpack.c.b16 %v1035, %v1033
        %v1144 = vpack.c.b16 %v1036, %v1034
        %v1145 = vpack.c.b16 %v1039, %v1037
        %v1146 = vpack.c.b16 %v1040, %v1038
        %v1147 = vpack.c.b16 %v1043, %v1041
        %v1148 = vpack.c.b16 %v1044, %v1042
        %v1149 = vpack.c.b16 %v1047, %v1045
        %v1150 = vpack.c.b16 %v1048, %v1046
        %v1151 = vpack.c.b16 %v1051, %v1049
        %v1152 = vpack.c.b16 %v1052, %v1050
        %v1153 = vpack.c.b16 %v1055, %v1053
        %v1154 = vpack.c.b16 %v1056, %v1054
        %vm1253 = vcmask 130048
        %v1255 = vsel %vm1253, %v547, 0
        %v1258 = vsel %vm1253, %v554, 0
        %v1261 = vsel %vm1253, %v561, 0
        %v1264 = vsel %vm1253, %v568, 0
        %v1267 = vsel %vm1253, %v575, 0
        %v1270 = vsel %vm1253, %v582, 0
        %v1273 = vsel %vm1253, %v589, 0
        %v1276 = vsel %vm1253, %v596, 0
        %v1279 = vsel %vm1253, %v603, 0
        %v1282 = vsel %vm1253, %v610, 0
        %v1285 = vsel %vm1253, %v617, 0
        %v1288 = vsel %vm1253, %v624, 0
        %v1291 = vsel %vm1253, %v631, 0
        %v1294 = vsel %vm1253, %v638, 0
        %v1297 = vsel %vm1253, %v645, 0
        %v1300 = vsel %vm1253, %v652, 0
        %1302 = vmatprep.subr.bf16.mxu0 %v1058
        %1303 = vmatpush1.bf16.msra.mxu0 %v1057
        %1304 = vmatprep.subr.bf16.mxu0 %v1060
        %1305 = vmatpush1.bf16.msra.mxu0 %v1059
        %1306 = vmatprep.subr.bf16.mxu0 %v1062
        %1307 = vmatpush1.bf16.msra.mxu0 %v1061
        %1308 = vmatprep.subr.bf16.mxu0 %v1064
        %1309 = vmatpush1.bf16.msra.mxu0 %v1063
        %1310 = vmatprep.subr.bf16.mxu0 %v1066
        %1311 = vmatpush1.bf16.msra.mxu0 %v1065
        %1312 = vmatprep.subr.bf16.mxu0 %v1068
        %1313 = vmatpush1.bf16.msra.mxu0 %v1067
        %1314 = vmatprep.subr.bf16.mxu0 %v1070
        %1315 = vmatpush1.bf16.msra.mxu0 %v1069
        %1316 = vmatprep.subr.bf16.mxu0 %v1072
        %1317 = vmatpush1.bf16.msra.mxu0 %v1071
        %1318 = vmatprep.subr.bf16.mxu0 %v1074
        %1319 = vmatpush1.bf16.msra.mxu0 %v1073
        %1320 = vmatprep.subr.bf16.mxu0 %v1076
        %1321 = vmatpush1.bf16.msra.mxu0 %v1075
        %1322 = vmatprep.subr.bf16.mxu0 %v1078
        %1323 = vmatpush1.bf16.msra.mxu0 %v1077
        %1324 = vmatprep.subr.bf16.mxu0 %v1080
        %1325 = vmatpush1.bf16.msra.mxu0 %v1079
        %1326 = vmatprep.subr.bf16.mxu0 %v1082
        %1327 = vmatpush1.bf16.msra.mxu0 %v1081
        %1328 = vmatprep.subr.bf16.mxu0 %v1084
        %1329 = vmatpush1.bf16.msra.mxu0 %v1083
        %1330 = vmatprep.subr.bf16.mxu0 %v1086
        %1331 = vmatpush1.bf16.msra.mxu0 %v1085
        %1332 = vmatprep.subr.bf16.mxu0 %v1088
        %1333 = vmatpush1.bf16.msra.mxu0 %v1087
        %1334 = vmatprep.mubr.bf16.mxu0 %v542
        %1335 = vmatmul.mubr.bf16.gmra.mrb[0].mxu0 %v541
        %v1336 = vpop.f32.mrb[0].mxu0
        %v1337 = vadd.f32 %v756, %v1336
        %v1338 = vpop.f32.mrb[0].mxu0
        %v1339 = vadd.f32 %v760, %v1338
        %v1340 = vpop.f32.mrb[0].mxu0
        %v1341 = vadd.f32 %v756, %v1340
        %v1342 = vpop.f32.mrb[0].mxu0
        %v1343 = vadd.f32 %v760, %v1342
        %1344 = vmatprep.mubr.bf16.mxu0 %v549
        %1345 = vmatmul.mubr.bf16.gmra.mrb[0].mxu0 %v548
        %v1346 = vpop.f32.mrb[0].mxu0
        %v1347 = vadd.f32 %v756, %v1346
        %v1348 = vpop.f32.mrb[0].mxu0
        %v1349 = vadd.f32 %v760, %v1348
        %v1350 = vpop.f32.mrb[0].mxu0
        %v1351 = vadd.f32 %v756, %v1350
        %v1352 = vpop.f32.mrb[0].mxu0
        %v1353 = vadd.f32 %v760, %v1352
        %1354 = vmatprep.mubr.bf16.mxu0 %v556
        %1355 = vmatmul.mubr.bf16.gmra.mrb[0].mxu0 %v555
        %v1356 = vpop.f32.mrb[0].mxu0
        %v1357 = vadd.f32 %v756, %v1356
        %v1358 = vpop.f32.mrb[0].mxu0
        %v1359 = vadd.f32 %v760, %v1358
        %v1360 = vpop.f32.mrb[0].mxu0
        %v1361 = vadd.f32 %v756, %v1360
        %v1362 = vpop.f32.mrb[0].mxu0
        %v1363 = vadd.f32 %v760, %v1362
        %1364 = vmatprep.mubr.bf16.mxu0 %v563
        %1365 = vmatmul.mubr.bf16.gmra.mrb[0].mxu0 %v562
        %v1366 = vpop.f32.mrb[0].mxu0
        %v1367 = vadd.f32 %v756, %v1366
        %v1368 = vpop.f32.mrb[0].mxu0
        %v1369 = vadd.f32 %v760, %v1368
        %v1370 = vpop.f32.mrb[0].mxu0
        %v1371 = vadd.f32 %v756, %v1370
        %v1372 = vpop.f32.mrb[0].mxu0
        %v1373 = vadd.f32 %v760, %v1372
        %1374 = vmatprep.mubr.bf16.mxu0 %v570
        %1375 = vmatmul.mubr.bf16.gmra.mrb[0].mxu0 %v569
        %v1376 = vpop.f32.mrb[0].mxu0
        %v1377 = vadd.f32 %v756, %v1376
        %v1378 = vpop.f32.mrb[0].mxu0
        %v1379 = vadd.f32 %v760, %v1378
        %v1380 = vpop.f32.mrb[0].mxu0
        %v1381 = vadd.f32 %v756, %v1380
        %v1382 = vpop.f32.mrb[0].mxu0
        %v1383 = vadd.f32 %v760, %v1382
        %1384 = vmatprep.mubr.bf16.mxu0 %v577
        %1385 = vmatmul.mubr.bf16.gmra.mrb[0].mxu0 %v576
        %v1386 = vpop.f32.mrb[0].mxu0
        %v1387 = vadd.f32 %v756, %v1386
        %v1388 = vpop.f32.mrb[0].mxu0
        %v1389 = vadd.f32 %v760, %v1388
        %v1390 = vpop.f32.mrb[0].mxu0
        %v1391 = vadd.f32 %v756, %v1390
        %v1392 = vpop.f32.mrb[0].mxu0
        %v1393 = vadd.f32 %v760, %v1392
        %1394 = vmatprep.mubr.bf16.mxu0 %v584
        %1395 = vmatmul.mubr.bf16.gmra.mrb[0].mxu0 %v583
        %v1396 = vpop.f32.mrb[0].mxu0
        %v1397 = vadd.f32 %v756, %v1396
        %v1398 = vpop.f32.mrb[0].mxu0
        %v1399 = vadd.f32 %v760, %v1398
        %v1400 = vpop.f32.mrb[0].mxu0
        %v1401 = vadd.f32 %v756, %v1400
        %v1402 = vpop.f32.mrb[0].mxu0
        %v1403 = vadd.f32 %v760, %v1402
        %1404 = vmatprep.mubr.bf16.mxu0 %v591
        %1405 = vmatmul.mubr.bf16.gmra.mrb[0].mxu0 %v590
        %v1406 = vpop.f32.mrb[0].mxu0
        %v1407 = vadd.f32 %v756, %v1406
        %v1408 = vpop.f32.mrb[0].mxu0
        %v1409 = vadd.f32 %v760, %v1408
        %v1410 = vpop.f32.mrb[0].mxu0
        %v1411 = vadd.f32 %v756, %v1410
        %v1412 = vpop.f32.mrb[0].mxu0
        %v1413 = vadd.f32 %v760, %v1412
        %1414 = vmatprep.mubr.bf16.mxu0 %v598
        %1415 = vmatmul.mubr.bf16.gmra.mrb[0].mxu0 %v597
        %v1416 = vpop.f32.mrb[0].mxu0
        %v1417 = vadd.f32 %v756, %v1416
        %v1418 = vpop.f32.mrb[0].mxu0
        %v1419 = vadd.f32 %v760, %v1418
        %v1420 = vpop.f32.mrb[0].mxu0
        %v1421 = vadd.f32 %v756, %v1420
        %v1422 = vpop.f32.mrb[0].mxu0
        %v1423 = vadd.f32 %v760, %v1422
        %1424 = vmatprep.mubr.bf16.mxu0 %v605
        %1425 = vmatmul.mubr.bf16.gmra.mrb[0].mxu0 %v604
        %v1426 = vpop.f32.mrb[0].mxu0
        %v1427 = vadd.f32 %v756, %v1426
        %v1428 = vpop.f32.mrb[0].mxu0
        %v1429 = vadd.f32 %v760, %v1428
        %v1430 = vpop.f32.mrb[0].mxu0
        %v1431 = vadd.f32 %v756, %v1430
        %v1432 = vpop.f32.mrb[0].mxu0
        %v1433 = vadd.f32 %v760, %v1432
        %1434 = vmatprep.mubr.bf16.mxu0 %v612
        %1435 = vmatmul.mubr.bf16.gmra.mrb[0].mxu0 %v611
        %v1436 = vpop.f32.mrb[0].mxu0
        %v1437 = vadd.f32 %v756, %v1436
        %v1438 = vpop.f32.mrb[0].mxu0
        %v1439 = vadd.f32 %v760, %v1438
        %v1440 = vpop.f32.mrb[0].mxu0
        %v1441 = vadd.f32 %v756, %v1440
        %v1442 = vpop.f32.mrb[0].mxu0
        %v1443 = vadd.f32 %v760, %v1442
        %1444 = vmatprep.mubr.bf16.mxu0 %v619
        %1445 = vmatmul.mubr.bf16.gmra.mrb[0].mxu0 %v618
        %v1446 = vpop.f32.mrb[0].mxu0
        %v1447 = vadd.f32 %v756, %v1446
        %v1448 = vpop.f32.mrb[0].mxu0
        %v1449 = vadd.f32 %v760, %v1448
        %v1450 = vpop.f32.mrb[0].mxu0
        %v1451 = vadd.f32 %v756, %v1450
        %v1452 = vpop.f32.mrb[0].mxu0
        %v1453 = vadd.f32 %v760, %v1452
        %1454 = vmatprep.mubr.bf16.mxu0 %v626
        %1455 = vmatmul.mubr.bf16.gmra.mrb[0].mxu0 %v625
        %v1456 = vpop.f32.mrb[0].mxu0
        %v1457 = vadd.f32 %v756, %v1456
        %v1458 = vpop.f32.mrb[0].mxu0
        %v1459 = vadd.f32 %v760, %v1458
        %v1460 = vpop.f32.mrb[0].mxu0
        %v1461 = vadd.f32 %v756, %v1460
        %v1462 = vpop.f32.mrb[0].mxu0
        %v1463 = vadd.f32 %v760, %v1462
        %1464 = vmatprep.mubr.bf16.mxu0 %v633
        %1465 = vmatmul.mubr.bf16.gmra.mrb[0].mxu0 %v632
        %v1466 = vpop.f32.mrb[0].mxu0
        %v1467 = vadd.f32 %v756, %v1466
        %v1468 = vpop.f32.mrb[0].mxu0
        %v1469 = vadd.f32 %v760, %v1468
        %v1470 = vpop.f32.mrb[0].mxu0
        %v1471 = vadd.f32 %v756, %v1470
        %v1472 = vpop.f32.mrb[0].mxu0
        %v1473 = vadd.f32 %v760, %v1472
        %1474 = vmatprep.mubr.bf16.mxu0 %v640
        %1475 = vmatmul.mubr.bf16.gmra.mrb[0].mxu0 %v639
        %v1476 = vpop.f32.mrb[0].mxu0
        %v1477 = vadd.f32 %v756, %v1476
        %v1478 = vpop.f32.mrb[0].mxu0
        %v1479 = vadd.f32 %v760, %v1478
        %v1480 = vpop.f32.mrb[0].mxu0
        %v1481 = vadd.f32 %v756, %v1480
        %v1482 = vpop.f32.mrb[0].mxu0
        %v1483 = vadd.f32 %v760, %v1482
        %1484 = vmatprep.mubr.bf16.mxu0 %v647
        %1485 = vmatmul.mubr.bf16.gmra.mrb[0].mxu0 %v646
        %v1486 = vpop.f32.mrb[0].mxu0
        %v1487 = vadd.f32 %v756, %v1486
        %v1488 = vpop.f32.mrb[0].mxu0
        %v1489 = vadd.f32 %v760, %v1488
        %v1490 = vpop.f32.mrb[0].mxu0
        %v1491 = vadd.f32 %v756, %v1490
        %v1492 = vpop.f32.mrb[0].mxu0
        %v1493 = vadd.f32 %v760, %v1492
        %1494 = vdwg.mxu0
        %1495 = vmatprep.subr.bf16.mxu0 %v1090
        %1496 = vmatpush1.bf16.msra.mxu0 %v1089
        %1497 = vmatprep.subr.bf16.mxu0 %v1092
        %1498 = vmatpush1.bf16.msra.mxu0 %v1091
        %1499 = vmatprep.subr.bf16.mxu0 %v1094
        %1500 = vmatpush1.bf16.msra.mxu0 %v1093
        %1501 = vmatprep.subr.bf16.mxu0 %v1096
        %1502 = vmatpush1.bf16.msra.mxu0 %v1095
        %1503 = vmatprep.subr.bf16.mxu0 %v1098
        %1504 = vmatpush1.bf16.msra.mxu0 %v1097
        %1505 = vmatprep.subr.bf16.mxu0 %v1100
        %1506 = vmatpush1.bf16.msra.mxu0 %v1099
        %1507 = vmatprep.subr.bf16.mxu0 %v1102
        %1508 = vmatpush1.bf16.msra.mxu0 %v1101
        %1509 = vmatprep.subr.bf16.mxu0 %v1104
        %1510 = vmatpush1.bf16.msra.mxu0 %v1103
        %1511 = vmatprep.subr.bf16.mxu0 %v1106
        %1512 = vmatpush1.bf16.msra.mxu0 %v1105
        %1513 = vmatprep.subr.bf16.mxu0 %v1108
        %1514 = vmatpush1.bf16.msra.mxu0 %v1107
        %1515 = vmatprep.subr.bf16.mxu0 %v1110
        %1516 = vmatpush1.bf16.msra.mxu0 %v1109
        %1517 = vmatprep.subr.bf16.mxu0 %v1112
        %1518 = vmatpush1.bf16.msra.mxu0 %v1111
        %1519 = vmatprep.subr.bf16.mxu0 %v1114
        %1520 = vmatpush1.bf16.msra.mxu0 %v1113
        %1521 = vmatprep.subr.bf16.mxu0 %v1116
        %1522 = vmatpush1.bf16.msra.mxu0 %v1115
        %1523 = vmatprep.subr.bf16.mxu0 %v1118
        %1524 = vmatpush1.bf16.msra.mxu0 %v1117
        %1525 = vmatprep.subr.bf16.mxu0 %v1120
        %1526 = vmatpush1.bf16.msra.mxu0 %v1119
        %1527 = vmatprep.mubr.bf16.mxu0 %v544
        %1528 = vmatmul.mubr.bf16.gmra.mrb[0].mxu0 %v543
        %v1529 = vpop.f32.mrb[0].mxu0
        %v1530 = vadd.f32 %v1337, %v1529
        %v1531 = vpop.f32.mrb[0].mxu0
        %v1532 = vadd.f32 %v1339, %v1531
        %v1533 = vpop.f32.mrb[0].mxu0
        %v1534 = vadd.f32 %v1341, %v1533
        %v1535 = vpop.f32.mrb[0].mxu0
        %v1536 = vadd.f32 %v1343, %v1535
        %1537 = vmatprep.mubr.bf16.mxu0 %v551
        %1538 = vmatmul.mubr.bf16.gmra.mrb[0].mxu0 %v550
        %v1539 = vpop.f32.mrb[0].mxu0
        %v1540 = vadd.f32 %v1347, %v1539
        %v1541 = vpop.f32.mrb[0].mxu0
        %v1542 = vadd.f32 %v1349, %v1541
        %v1543 = vpop.f32.mrb[0].mxu0
        %v1544 = vadd.f32 %v1351, %v1543
        %v1545 = vpop.f32.mrb[0].mxu0
        %v1546 = vadd.f32 %v1353, %v1545
        %1547 = vmatprep.mubr.bf16.mxu0 %v558
        %1548 = vmatmul.mubr.bf16.gmra.mrb[0].mxu0 %v557
        %v1549 = vpop.f32.mrb[0].mxu0
        %v1550 = vadd.f32 %v1357, %v1549
        %v1551 = vpop.f32.mrb[0].mxu0
        %v1552 = vadd.f32 %v1359, %v1551
        %v1553 = vpop.f32.mrb[0].mxu0
        %v1554 = vadd.f32 %v1361, %v1553
        %v1555 = vpop.f32.mrb[0].mxu0
        %v1556 = vadd.f32 %v1363, %v1555
        %1557 = vmatprep.mubr.bf16.mxu0 %v565
        %1558 = vmatmul.mubr.bf16.gmra.mrb[0].mxu0 %v564
        %v1559 = vpop.f32.mrb[0].mxu0
        %v1560 = vadd.f32 %v1367, %v1559
        %v1561 = vpop.f32.mrb[0].mxu0
        %v1562 = vadd.f32 %v1369, %v1561
        %v1563 = vpop.f32.mrb[0].mxu0
        %v1564 = vadd.f32 %v1371, %v1563
        %v1565 = vpop.f32.mrb[0].mxu0
        %v1566 = vadd.f32 %v1373, %v1565
        %1567 = vmatprep.mubr.bf16.mxu0 %v572
        %1568 = vmatmul.mubr.bf16.gmra.mrb[0].mxu0 %v571
        %v1569 = vpop.f32.mrb[0].mxu0
        %v1570 = vadd.f32 %v1377, %v1569
        %v1571 = vpop.f32.mrb[0].mxu0
        %v1572 = vadd.f32 %v1379, %v1571
        %v1573 = vpop.f32.mrb[0].mxu0
        %v1574 = vadd.f32 %v1381, %v1573
        %v1575 = vpop.f32.mrb[0].mxu0
        %v1576 = vadd.f32 %v1383, %v1575
        %1577 = vmatprep.mubr.bf16.mxu0 %v579
        %1578 = vmatmul.mubr.bf16.gmra.mrb[0].mxu0 %v578
        %v1579 = vpop.f32.mrb[0].mxu0
        %v1580 = vadd.f32 %v1387, %v1579
        %v1581 = vpop.f32.mrb[0].mxu0
        %v1582 = vadd.f32 %v1389, %v1581
        %v1583 = vpop.f32.mrb[0].mxu0
        %v1584 = vadd.f32 %v1391, %v1583
        %v1585 = vpop.f32.mrb[0].mxu0
        %v1586 = vadd.f32 %v1393, %v1585
        %1587 = vmatprep.mubr.bf16.mxu0 %v586
        %1588 = vmatmul.mubr.bf16.gmra.mrb[0].mxu0 %v585
        %v1589 = vpop.f32.mrb[0].mxu0
        %v1590 = vadd.f32 %v1397, %v1589
        %v1591 = vpop.f32.mrb[0].mxu0
        %v1592 = vadd.f32 %v1399, %v1591
        %v1593 = vpop.f32.mrb[0].mxu0
        %v1594 = vadd.f32 %v1401, %v1593
        %v1595 = vpop.f32.mrb[0].mxu0
        %v1596 = vadd.f32 %v1403, %v1595
        %1597 = vmatprep.mubr.bf16.mxu0 %v593
        %1598 = vmatmul.mubr.bf16.gmra.mrb[0].mxu0 %v592
        %v1599 = vpop.f32.mrb[0].mxu0
        %v1600 = vadd.f32 %v1407, %v1599
        %v1601 = vpop.f32.mrb[0].mxu0
        %v1602 = vadd.f32 %v1409, %v1601
        %v1603 = vpop.f32.mrb[0].mxu0
        %v1604 = vadd.f32 %v1411, %v1603
        %v1605 = vpop.f32.mrb[0].mxu0
        %v1606 = vadd.f32 %v1413, %v1605
        %1607 = vmatprep.mubr.bf16.mxu0 %v600
        %1608 = vmatmul.mubr.bf16.gmra.mrb[0].mxu0 %v599
        %v1609 = vpop.f32.mrb[0].mxu0
        %v1610 = vadd.f32 %v1417, %v1609
        %v1611 = vpop.f32.mrb[0].mxu0
        %v1612 = vadd.f32 %v1419, %v1611
        %v1613 = vpop.f32.mrb[0].mxu0
        %v1614 = vadd.f32 %v1421, %v1613
        %v1615 = vpop.f32.mrb[0].mxu0
        %v1616 = vadd.f32 %v1423, %v1615
        %1617 = vmatprep.mubr.bf16.mxu0 %v607
        %1618 = vmatmul.mubr.bf16.gmra.mrb[0].mxu0 %v606
        %v1619 = vpop.f32.mrb[0].mxu0
        %v1620 = vadd.f32 %v1427, %v1619
        %v1621 = vpop.f32.mrb[0].mxu0
        %v1622 = vadd.f32 %v1429, %v1621
        %v1623 = vpop.f32.mrb[0].mxu0
        %v1624 = vadd.f32 %v1431, %v1623
        %v1625 = vpop.f32.mrb[0].mxu0
        %v1626 = vadd.f32 %v1433, %v1625
        %1627 = vmatprep.mubr.bf16.mxu0 %v614
        %1628 = vmatmul.mubr.bf16.gmra.mrb[0].mxu0 %v613
        %v1629 = vpop.f32.mrb[0].mxu0
        %v1630 = vadd.f32 %v1437, %v1629
        %v1631 = vpop.f32.mrb[0].mxu0
        %v1632 = vadd.f32 %v1439, %v1631
        %v1633 = vpop.f32.mrb[0].mxu0
        %v1634 = vadd.f32 %v1441, %v1633
        %v1635 = vpop.f32.mrb[0].mxu0
        %v1636 = vadd.f32 %v1443, %v1635
        %1637 = vmatprep.mubr.bf16.mxu0 %v621
        %1638 = vmatmul.mubr.bf16.gmra.mrb[0].mxu0 %v620
        %v1639 = vpop.f32.mrb[0].mxu0
        %v1640 = vadd.f32 %v1447, %v1639
        %v1641 = vpop.f32.mrb[0].mxu0
        %v1642 = vadd.f32 %v1449, %v1641
        %v1643 = vpop.f32.mrb[0].mxu0
        %v1644 = vadd.f32 %v1451, %v1643
        %v1645 = vpop.f32.mrb[0].mxu0
        %v1646 = vadd.f32 %v1453, %v1645
        %1647 = vmatprep.mubr.bf16.mxu0 %v628
        %1648 = vmatmul.mubr.bf16.gmra.mrb[0].mxu0 %v627
        %v1649 = vpop.f32.mrb[0].mxu0
        %v1650 = vadd.f32 %v1457, %v1649
        %v1651 = vpop.f32.mrb[0].mxu0
        %v1652 = vadd.f32 %v1459, %v1651
        %v1653 = vpop.f32.mrb[0].mxu0
        %v1654 = vadd.f32 %v1461, %v1653
        %v1655 = vpop.f32.mrb[0].mxu0
        %v1656 = vadd.f32 %v1463, %v1655
        %1657 = vmatprep.mubr.bf16.mxu0 %v635
        %1658 = vmatmul.mubr.bf16.gmra.mrb[0].mxu0 %v634
        %v1659 = vpop.f32.mrb[0].mxu0
        %v1660 = vadd.f32 %v1467, %v1659
        %v1661 = vpop.f32.mrb[0].mxu0
        %v1662 = vadd.f32 %v1469, %v1661
        %v1663 = vpop.f32.mrb[0].mxu0
        %v1664 = vadd.f32 %v1471, %v1663
        %v1665 = vpop.f32.mrb[0].mxu0
        %v1666 = vadd.f32 %v1473, %v1665
        %1667 = vmatprep.mubr.bf16.mxu0 %v642
        %1668 = vmatmul.mubr.bf16.gmra.mrb[0].mxu0 %v641
        %v1669 = vpop.f32.mrb[0].mxu0
        %v1670 = vadd.f32 %v1477, %v1669
        %v1671 = vpop.f32.mrb[0].mxu0
        %v1672 = vadd.f32 %v1479, %v1671
        %v1673 = vpop.f32.mrb[0].mxu0
        %v1674 = vadd.f32 %v1481, %v1673
        %v1675 = vpop.f32.mrb[0].mxu0
        %v1676 = vadd.f32 %v1483, %v1675
        %1677 = vmatprep.mubr.bf16.mxu0 %v649
        %1678 = vmatmul.mubr.bf16.gmra.mrb[0].mxu0 %v648
        %v1679 = vpop.f32.mrb[0].mxu0
        %v1680 = vadd.f32 %v1487, %v1679
        %v1681 = vpop.f32.mrb[0].mxu0
        %v1682 = vadd.f32 %v1489, %v1681
        %v1683 = vpop.f32.mrb[0].mxu0
        %v1684 = vadd.f32 %v1491, %v1683
        %v1685 = vpop.f32.mrb[0].mxu0
        %v1686 = vadd.f32 %v1493, %v1685
        %1687 = vdwg.mxu0
        %1688 = vmatprep.subr.bf16.mxu0 %v1122
        %1689 = vmatpush1.bf16.msra.mxu0 %v1121
        %1690 = vmatprep.subr.bf16.mxu0 %v1124
        %1691 = vmatpush1.bf16.msra.mxu0 %v1123
        %1692 = vmatprep.subr.bf16.mxu0 %v1126
        %1693 = vmatpush1.bf16.msra.mxu0 %v1125
        %1694 = vmatprep.subr.bf16.mxu0 %v1128
        %1695 = vmatpush1.bf16.msra.mxu0 %v1127
        %1696 = vmatprep.subr.bf16.mxu0 %v1130
        %1697 = vmatpush1.bf16.msra.mxu0 %v1129
        %1698 = vmatprep.subr.bf16.mxu0 %v1132
        %1699 = vmatpush1.bf16.msra.mxu0 %v1131
        %1700 = vmatprep.subr.bf16.mxu0 %v1134
        %1701 = vmatpush1.bf16.msra.mxu0 %v1133
        %1702 = vmatprep.subr.bf16.mxu0 %v1136
        %1703 = vmatpush1.bf16.msra.mxu0 %v1135
        %1704 = vmatprep.subr.bf16.mxu0 %v1138
        %1705 = vmatpush1.bf16.msra.mxu0 %v1137
        %1706 = vmatprep.subr.bf16.mxu0 %v1140
        %1707 = vmatpush1.bf16.msra.mxu0 %v1139
        %1708 = vmatprep.subr.bf16.mxu0 %v1142
        %1709 = vmatpush1.bf16.msra.mxu0 %v1141
        %1710 = vmatprep.subr.bf16.mxu0 %v1144
        %1711 = vmatpush1.bf16.msra.mxu0 %v1143
        %1712 = vmatprep.subr.bf16.mxu0 %v1146
        %1713 = vmatpush1.bf16.msra.mxu0 %v1145
        %1714 = vmatprep.subr.bf16.mxu0 %v1148
        %1715 = vmatpush1.bf16.msra.mxu0 %v1147
        %1716 = vmatprep.subr.bf16.mxu0 %v1150
        %1717 = vmatpush1.bf16.msra.mxu0 %v1149
        %1718 = vmatprep.subr.bf16.mxu0 %v1152
        %1719 = vmatpush1.bf16.msra.mxu0 %v1151
        %1720 = vmatprep.mubr.bf16.mxu0 %v546
        %1721 = vmatmul.mubr.bf16.gmra.mrb[0].mxu0 %v545
        %v1722 = vpop.f32.mrb[0].mxu0
        %v1723 = vadd.f32 %v1530, %v1722
        %v1724 = vpop.f32.mrb[0].mxu0
        %v1725 = vadd.f32 %v1532, %v1724
        %v1726 = vpop.f32.mrb[0].mxu0
        %v1727 = vadd.f32 %v1534, %v1726
        %v1728 = vpop.f32.mrb[0].mxu0
        %v1729 = vadd.f32 %v1536, %v1728
        %1730 = vmatprep.mubr.bf16.mxu0 %v553
        %1731 = vmatmul.mubr.bf16.gmra.mrb[0].mxu0 %v552
        %v1732 = vpop.f32.mrb[0].mxu0
        %v1733 = vadd.f32 %v1540, %v1732
        %v1734 = vpop.f32.mrb[0].mxu0
        %v1735 = vadd.f32 %v1542, %v1734
        %v1736 = vpop.f32.mrb[0].mxu0
        %v1737 = vadd.f32 %v1544, %v1736
        %v1738 = vpop.f32.mrb[0].mxu0
        %v1739 = vadd.f32 %v1546, %v1738
        %1740 = vmatprep.mubr.bf16.mxu0 %v560
        %1741 = vmatmul.mubr.bf16.gmra.mrb[0].mxu0 %v559
        %v1742 = vpop.f32.mrb[0].mxu0
        %v1743 = vadd.f32 %v1550, %v1742
        %v1744 = vpop.f32.mrb[0].mxu0
        %v1745 = vadd.f32 %v1552, %v1744
        %v1746 = vpop.f32.mrb[0].mxu0
        %v1747 = vadd.f32 %v1554, %v1746
        %v1748 = vpop.f32.mrb[0].mxu0
        %v1749 = vadd.f32 %v1556, %v1748
        %1750 = vmatprep.mubr.bf16.mxu0 %v567
        %1751 = vmatmul.mubr.bf16.gmra.mrb[0].mxu0 %v566
        %v1752 = vpop.f32.mrb[0].mxu0
        %v1753 = vadd.f32 %v1560, %v1752
        %v1754 = vpop.f32.mrb[0].mxu0
        %v1755 = vadd.f32 %v1562, %v1754
        %v1756 = vpop.f32.mrb[0].mxu0
        %v1757 = vadd.f32 %v1564, %v1756
        %v1758 = vpop.f32.mrb[0].mxu0
        %v1759 = vadd.f32 %v1566, %v1758
        %1760 = vmatprep.mubr.bf16.mxu0 %v574
        %1761 = vmatmul.mubr.bf16.gmra.mrb[0].mxu0 %v573
        %v1762 = vpop.f32.mrb[0].mxu0
        %v1763 = vadd.f32 %v1570, %v1762
        %v1764 = vpop.f32.mrb[0].mxu0
        %v1765 = vadd.f32 %v1572, %v1764
        %v1766 = vpop.f32.mrb[0].mxu0
        %v1767 = vadd.f32 %v1574, %v1766
        %v1768 = vpop.f32.mrb[0].mxu0
        %v1769 = vadd.f32 %v1576, %v1768
        %1770 = vmatprep.mubr.bf16.mxu0 %v581
        %1771 = vmatmul.mubr.bf16.gmra.mrb[0].mxu0 %v580
        %v1772 = vpop.f32.mrb[0].mxu0
        %v1773 = vadd.f32 %v1580, %v1772
        %v1774 = vpop.f32.mrb[0].mxu0
        %v1775 = vadd.f32 %v1582, %v1774
        %v1776 = vpop.f32.mrb[0].mxu0
        %v1777 = vadd.f32 %v1584, %v1776
        %v1778 = vpop.f32.mrb[0].mxu0
        %v1779 = vadd.f32 %v1586, %v1778
        %1780 = vmatprep.mubr.bf16.mxu0 %v588
        %1781 = vmatmul.mubr.bf16.gmra.mrb[0].mxu0 %v587
        %v1782 = vpop.f32.mrb[0].mxu0
        %v1783 = vadd.f32 %v1590, %v1782
        %v1784 = vpop.f32.mrb[0].mxu0
        %v1785 = vadd.f32 %v1592, %v1784
        %v1786 = vpop.f32.mrb[0].mxu0
        %v1787 = vadd.f32 %v1594, %v1786
        %v1788 = vpop.f32.mrb[0].mxu0
        %v1789 = vadd.f32 %v1596, %v1788
        %1790 = vmatprep.mubr.bf16.mxu0 %v595
        %1791 = vmatmul.mubr.bf16.gmra.mrb[0].mxu0 %v594
        %v1792 = vpop.f32.mrb[0].mxu0
        %v1793 = vadd.f32 %v1600, %v1792
        %v1794 = vpop.f32.mrb[0].mxu0
        %v1795 = vadd.f32 %v1602, %v1794
        %v1796 = vpop.f32.mrb[0].mxu0
        %v1797 = vadd.f32 %v1604, %v1796
        %v1798 = vpop.f32.mrb[0].mxu0
        %v1799 = vadd.f32 %v1606, %v1798
        %1800 = vmatprep.mubr.bf16.mxu0 %v602
        %1801 = vmatmul.mubr.bf16.gmra.mrb[0].mxu0 %v601
        %v1802 = vpop.f32.mrb[0].mxu0
        %v1803 = vadd.f32 %v1610, %v1802
        %v1804 = vpop.f32.mrb[0].mxu0
        %v1805 = vadd.f32 %v1612, %v1804
        %v1806 = vpop.f32.mrb[0].mxu0
        %v1807 = vadd.f32 %v1614, %v1806
        %v1808 = vpop.f32.mrb[0].mxu0
        %v1809 = vadd.f32 %v1616, %v1808
        %1810 = vmatprep.mubr.bf16.mxu0 %v609
        %1811 = vmatmul.mubr.bf16.gmra.mrb[0].mxu0 %v608
        %v1812 = vpop.f32.mrb[0].mxu0
        %v1813 = vadd.f32 %v1620, %v1812
        %v1814 = vpop.f32.mrb[0].mxu0
        %v1815 = vadd.f32 %v1622, %v1814
        %v1816 = vpop.f32.mrb[0].mxu0
        %v1817 = vadd.f32 %v1624, %v1816
        %v1818 = vpop.f32.mrb[0].mxu0
        %v1819 = vadd.f32 %v1626, %v1818
        %1820 = vmatprep.mubr.bf16.mxu0 %v616
        %1821 = vmatmul.mubr.bf16.gmra.mrb[0].mxu0 %v615
        %v1822 = vpop.f32.mrb[0].mxu0
        %v1823 = vadd.f32 %v1630, %v1822
        %v1824 = vpop.f32.mrb[0].mxu0
        %v1825 = vadd.f32 %v1632, %v1824
        %v1826 = vpop.f32.mrb[0].mxu0
        %v1827 = vadd.f32 %v1634, %v1826
        %v1828 = vpop.f32.mrb[0].mxu0
        %v1829 = vadd.f32 %v1636, %v1828
        %1830 = vmatprep.mubr.bf16.mxu0 %v623
        %1831 = vmatmul.mubr.bf16.gmra.mrb[0].mxu0 %v622
        %v1832 = vpop.f32.mrb[0].mxu0
        %v1833 = vadd.f32 %v1640, %v1832
        %v1834 = vpop.f32.mrb[0].mxu0
        %v1835 = vadd.f32 %v1642, %v1834
        %v1836 = vpop.f32.mrb[0].mxu0
        %v1837 = vadd.f32 %v1644, %v1836
        %v1838 = vpop.f32.mrb[0].mxu0
        %v1839 = vadd.f32 %v1646, %v1838
        %1840 = vmatprep.mubr.bf16.mxu0 %v630
        %1841 = vmatmul.mubr.bf16.gmra.mrb[0].mxu0 %v629
        %v1842 = vpop.f32.mrb[0].mxu0
        %v1843 = vadd.f32 %v1650, %v1842
        %v1844 = vpop.f32.mrb[0].mxu0
        %v1845 = vadd.f32 %v1652, %v1844
        %v1846 = vpop.f32.mrb[0].mxu0
        %v1847 = vadd.f32 %v1654, %v1846
        %v1848 = vpop.f32.mrb[0].mxu0
        %v1849 = vadd.f32 %v1656, %v1848
        %1850 = vmatprep.mubr.bf16.mxu0 %v637
        %1851 = vmatmul.mubr.bf16.gmra.mrb[0].mxu0 %v636
        %v1852 = vpop.f32.mrb[0].mxu0
        %v1853 = vadd.f32 %v1660, %v1852
        %v1854 = vpop.f32.mrb[0].mxu0
        %v1855 = vadd.f32 %v1662, %v1854
        %v1856 = vpop.f32.mrb[0].mxu0
        %v1857 = vadd.f32 %v1664, %v1856
        %v1858 = vpop.f32.mrb[0].mxu0
        %v1859 = vadd.f32 %v1666, %v1858
        %1860 = vmatprep.mubr.bf16.mxu0 %v644
        %1861 = vmatmul.mubr.bf16.gmra.mrb[0].mxu0 %v643
        %v1862 = vpop.f32.mrb[0].mxu0
        %v1863 = vadd.f32 %v1670, %v1862
        %v1864 = vpop.f32.mrb[0].mxu0
        %v1865 = vadd.f32 %v1672, %v1864
        %v1866 = vpop.f32.mrb[0].mxu0
        %v1867 = vadd.f32 %v1674, %v1866
        %v1868 = vpop.f32.mrb[0].mxu0
        %v1869 = vadd.f32 %v1676, %v1868
        %1870 = vmatprep.mubr.bf16.mxu0 %v651
        %1871 = vmatmul.mubr.bf16.gmra.mrb[0].mxu0 %v650
        %v1872 = vpop.f32.mrb[0].mxu0
        %v1873 = vadd.f32 %v1680, %v1872
        %v1874 = vpop.f32.mrb[0].mxu0
        %v1875 = vadd.f32 %v1682, %v1874
        %v1876 = vpop.f32.mrb[0].mxu0
        %v1877 = vadd.f32 %v1684, %v1876
        %v1878 = vpop.f32.mrb[0].mxu0
        %v1879 = vadd.f32 %v1686, %v1878
        %1880 = vdwg.mxu0
        %1881 = vmatprep.subr.bf16.mxu0 %v1154
        %1882 = vmatpush1.bf16.msra.mxu0 %v1153
        %1883 = vmatprep.subr.bf16.mxu0 0
        %1884 = vmatpush1.bf16.msra.mxu0 0
        %1885 = vmatprep.subr.bf16.mxu0 0
        %1886 = vmatpush1.bf16.msra.mxu0 0
        %1887 = vmatprep.subr.bf16.mxu0 0
        %1888 = vmatpush1.bf16.msra.mxu0 0
        %1889 = vmatprep.subr.bf16.mxu0 0
        %1890 = vmatpush1.bf16.msra.mxu0 0
        %1891 = vmatprep.subr.bf16.mxu0 0
        %1892 = vmatpush1.bf16.msra.mxu0 0
        %1893 = vmatprep.subr.bf16.mxu0 0
        %1894 = vmatpush1.bf16.msra.mxu0 0
        %1895 = vmatprep.subr.bf16.mxu0 0
        %1896 = vmatpush1.bf16.msra.mxu0 0
        %1897 = vmatprep.subr.bf16.mxu0 0
        %1898 = vmatpush1.bf16.msra.mxu0 0
        %1899 = vmatprep.subr.bf16.mxu0 0
        %1900 = vmatpush1.bf16.msra.mxu0 0
        %1901 = vmatprep.subr.bf16.mxu0 0
        %1902 = vmatpush1.bf16.msra.mxu0 0
        %1903 = vmatprep.subr.bf16.mxu0 0
        %1904 = vmatpush1.bf16.msra.mxu0 0
        %1905 = vmatprep.subr.bf16.mxu0 0
        %1906 = vmatpush1.bf16.msra.mxu0 0
        %1907 = vmatprep.subr.bf16.mxu0 0
        %1908 = vmatpush1.bf16.msra.mxu0 0
        %1909 = vmatprep.subr.bf16.mxu0 0
        %1910 = vmatpush1.bf16.msra.mxu0 0
        %1911 = vmatprep.subr.bf16.mxu0 0
        %1912 = vmatpush1.bf16.msra.mxu0 0
        %1913 = vmatprep.mubr.bf16.mxu0 0
        %1914 = vmatmul.mubr.bf16.gmra.mrb[0].mxu0 %v1255
        %v1915 = vpop.f32.mrb[0].mxu0
        %v1916 = vadd.f32 %v1723, %v1915
        %v1917 = vpop.f32.mrb[0].mxu0
        %v1918 = vadd.f32 %v1725, %v1917
        %v1919 = vpop.f32.mrb[0].mxu0
        %v1920 = vadd.f32 %v1727, %v1919
        %v1921 = vpop.f32.mrb[0].mxu0
        %v1922 = vadd.f32 %v1729, %v1921
        %1923 = vmatprep.mubr.bf16.mxu0 0
        %1924 = vmatmul.mubr.bf16.gmra.mrb[0].mxu0 %v1258
        %v1925 = vpop.f32.mrb[0].mxu0
        %v1926 = vadd.f32 %v1733, %v1925
        %v1927 = vpop.f32.mrb[0].mxu0
        %v1928 = vadd.f32 %v1735, %v1927
        %v1929 = vpop.f32.mrb[0].mxu0
        %v1930 = vadd.f32 %v1737, %v1929
        %v1931 = vpop.f32.mrb[0].mxu0
        %v1932 = vadd.f32 %v1739, %v1931
        %1933 = vmatprep.mubr.bf16.mxu0 0
        %1934 = vmatmul.mubr.bf16.gmra.mrb[0].mxu0 %v1261
        %v1935 = vpop.f32.mrb[0].mxu0
        %v1936 = vadd.f32 %v1743, %v1935
        %v1937 = vpop.f32.mrb[0].mxu0
        %v1938 = vadd.f32 %v1745, %v1937
        %v1939 = vpop.f32.mrb[0].mxu0
        %v1940 = vadd.f32 %v1747, %v1939
        %v1941 = vpop.f32.mrb[0].mxu0
        %v1942 = vadd.f32 %v1749, %v1941
        %1943 = vmatprep.mubr.bf16.mxu0 0
        %1944 = vmatmul.mubr.bf16.gmra.mrb[0].mxu0 %v1264
        %v1945 = vpop.f32.mrb[0].mxu0
        %v1946 = vadd.f32 %v1753, %v1945
        %v1947 = vpop.f32.mrb[0].mxu0
        %v1948 = vadd.f32 %v1755, %v1947
        %v1949 = vpop.f32.mrb[0].mxu0
        %v1950 = vadd.f32 %v1757, %v1949
        %v1951 = vpop.f32.mrb[0].mxu0
        %v1952 = vadd.f32 %v1759, %v1951
        %1953 = vmatprep.mubr.bf16.mxu0 0
        %1954 = vmatmul.mubr.bf16.gmra.mrb[0].mxu0 %v1267
        %v1955 = vpop.f32.mrb[0].mxu0
        %v1956 = vadd.f32 %v1763, %v1955
        %v1957 = vpop.f32.mrb[0].mxu0
        %v1958 = vadd.f32 %v1765, %v1957
        %v1959 = vpop.f32.mrb[0].mxu0
        %v1960 = vadd.f32 %v1767, %v1959
        %v1961 = vpop.f32.mrb[0].mxu0
        %v1962 = vadd.f32 %v1769, %v1961
        %1963 = vmatprep.mubr.bf16.mxu0 0
        %1964 = vmatmul.mubr.bf16.gmra.mrb[0].mxu0 %v1270
        %v1965 = vpop.f32.mrb[0].mxu0
        %v1966 = vadd.f32 %v1773, %v1965
        %v1967 = vpop.f32.mrb[0].mxu0
        %v1968 = vadd.f32 %v1775, %v1967
        %v1969 = vpop.f32.mrb[0].mxu0
        %v1970 = vadd.f32 %v1777, %v1969
        %v1971 = vpop.f32.mrb[0].mxu0
        %v1972 = vadd.f32 %v1779, %v1971
        %1973 = vmatprep.mubr.bf16.mxu0 0
        %1974 = vmatmul.mubr.bf16.gmra.mrb[0].mxu0 %v1273
        %v1975 = vpop.f32.mrb[0].mxu0
        %v1976 = vadd.f32 %v1783, %v1975
        %v1977 = vpop.f32.mrb[0].mxu0
        %v1978 = vadd.f32 %v1785, %v1977
        %v1979 = vpop.f32.mrb[0].mxu0
        %v1980 = vadd.f32 %v1787, %v1979
        %v1981 = vpop.f32.mrb[0].mxu0
        %v1982 = vadd.f32 %v1789, %v1981
        %1983 = vmatprep.mubr.bf16.mxu0 0
        %1984 = vmatmul.mubr.bf16.gmra.mrb[0].mxu0 %v1276
        %v1985 = vpop.f32.mrb[0].mxu0
        %v1986 = vadd.f32 %v1793, %v1985
        %v1987 = vpop.f32.mrb[0].mxu0
        %v1988 = vadd.f32 %v1795, %v1987
        %v1989 = vpop.f32.mrb[0].mxu0
        %v1990 = vadd.f32 %v1797, %v1989
        %v1991 = vpop.f32.mrb[0].mxu0
        %v1992 = vadd.f32 %v1799, %v1991
        %1993 = vmatprep.mubr.bf16.mxu0 0
        %1994 = vmatmul.mubr.bf16.gmra.mrb[0].mxu0 %v1279
        %v1995 = vpop.f32.mrb[0].mxu0
        %v1996 = vadd.f32 %v1803, %v1995
        %v1997 = vpop.f32.mrb[0].mxu0
        %v1998 = vadd.f32 %v1805, %v1997
        %v1999 = vpop.f32.mrb[0].mxu0
        %v2000 = vadd.f32 %v1807, %v1999
        %v2001 = vpop.f32.mrb[0].mxu0
        %v2002 = vadd.f32 %v1809, %v2001
        %2003 = vmatprep.mubr.bf16.mxu0 0
        %2004 = vmatmul.mubr.bf16.gmra.mrb[0].mxu0 %v1282
        %v2005 = vpop.f32.mrb[0].mxu0
        %v2006 = vadd.f32 %v1813, %v2005
        %v2007 = vpop.f32.mrb[0].mxu0
        %v2008 = vadd.f32 %v1815, %v2007
        %v2009 = vpop.f32.mrb[0].mxu0
        %v2010 = vadd.f32 %v1817, %v2009
        %v2011 = vpop.f32.mrb[0].mxu0
        %v2012 = vadd.f32 %v1819, %v2011
        %2013 = vmatprep.mubr.bf16.mxu0 0
        %2014 = vmatmul.mubr.bf16.gmra.mrb[0].mxu0 %v1285
        %v2015 = vpop.f32.mrb[0].mxu0
        %v2016 = vadd.f32 %v1823, %v2015
        %v2017 = vpop.f32.mrb[0].mxu0
        %v2018 = vadd.f32 %v1825, %v2017
        %v2019 = vpop.f32.mrb[0].mxu0
        %v2020 = vadd.f32 %v1827, %v2019
        %v2021 = vpop.f32.mrb[0].mxu0
        %v2022 = vadd.f32 %v1829, %v2021
        %2023 = vmatprep.mubr.bf16.mxu0 0
        %2024 = vmatmul.mubr.bf16.gmra.mrb[0].mxu0 %v1288
        %v2025 = vpop.f32.mrb[0].mxu0
        %v2026 = vadd.f32 %v1833, %v2025
        %v2027 = vpop.f32.mrb[0].mxu0
        %v2028 = vadd.f32 %v1835, %v2027
        %v2029 = vpop.f32.mrb[0].mxu0
        %v2030 = vadd.f32 %v1837, %v2029
        %v2031 = vpop.f32.mrb[0].mxu0
        %v2032 = vadd.f32 %v1839, %v2031
        %2033 = vmatprep.mubr.bf16.mxu0 0
        %2034 = vmatmul.mubr.bf16.gmra.mrb[0].mxu0 %v1291
        %v2035 = vpop.f32.mrb[0].mxu0
        %v2036 = vadd.f32 %v1843, %v2035
        %v2037 = vpop.f32.mrb[0].mxu0
        %v2038 = vadd.f32 %v1845, %v2037
        %v2039 = vpop.f32.mrb[0].mxu0
        %v2040 = vadd.f32 %v1847, %v2039
        %v2041 = vpop.f32.mrb[0].mxu0
        %v2042 = vadd.f32 %v1849, %v2041
        %2043 = vmatprep.mubr.bf16.mxu0 0
        %2044 = vmatmul.mubr.bf16.gmra.mrb[0].mxu0 %v1294
        %v2045 = vpop.f32.mrb[0].mxu0
        %v2046 = vadd.f32 %v1853, %v2045
        %v2047 = vpop.f32.mrb[0].mxu0
        %v2048 = vadd.f32 %v1855, %v2047
        %v2049 = vpop.f32.mrb[0].mxu0
        %v2050 = vadd.f32 %v1857, %v2049
        %v2051 = vpop.f32.mrb[0].mxu0
        %v2052 = vadd.f32 %v1859, %v2051
        %2053 = vmatprep.mubr.bf16.mxu0 0
        %2054 = vmatmul.mubr.bf16.gmra.mrb[0].mxu0 %v1297
        %v2055 = vpop.f32.mrb[0].mxu0
        %v2056 = vadd.f32 %v1863, %v2055
        %v2057 = vpop.f32.mrb[0].mxu0
        %v2058 = vadd.f32 %v1865, %v2057
        %v2059 = vpop.f32.mrb[0].mxu0
        %v2060 = vadd.f32 %v1867, %v2059
        %v2061 = vpop.f32.mrb[0].mxu0
        %v2062 = vadd.f32 %v1869, %v2061
        %2063 = vmatprep.mubr.bf16.mxu0 0
        %2064 = vmatmul.mubr.bf16.gmra.mrb[0].mxu0 %v1300
        %v2065 = vpop.f32.mrb[0].mxu0
        %v2066 = vadd.f32 %v1873, %v2065
        %v2067 = vpop.f32.mrb[0].mxu0
        %v2068 = vadd.f32 %v1875, %v2067
        %v2069 = vpop.f32.mrb[0].mxu0
        %v2070 = vadd.f32 %v1877, %v2069
        %v2071 = vpop.f32.mrb[0].mxu0
        %v2072 = vadd.f32 %v1879, %v2071
        %2073 = vdwg.mxu0
        %v2074 = vmax.f32 %v1916, 0.0
        %v2075 = vmax.f32 %v1918, 0.0
        %v2076 = vmax.f32 %v1920, 0.0
        %v2077 = vmax.f32 %v1922, 0.0
        %v2078 = vmax.f32 %v1926, 0.0
        %v2079 = vmax.f32 %v1928, 0.0
        %v2080 = vmax.f32 %v1930, 0.0
        %v2081 = vmax.f32 %v1932, 0.0
        %v2082 = vmax.f32 %v1936, 0.0
        %v2083 = vmax.f32 %v1938, 0.0
        %v2084 = vmax.f32 %v1940, 0.0
        %v2085 = vmax.f32 %v1942, 0.0
        %v2086 = vmax.f32 %v1946, 0.0
        %v2087 = vmax.f32 %v1948, 0.0
        %v2088 = vmax.f32 %v1950, 0.0
        %v2089 = vmax.f32 %v1952, 0.0
        %v2090 = vmax.f32 %v1956, 0.0
        %v2091 = vmax.f32 %v1958, 0.0
        %v2092 = vmax.f32 %v1960, 0.0
        %v2093 = vmax.f32 %v1962, 0.0
        %v2094 = vmax.f32 %v1966, 0.0
        %v2095 = vmax.f32 %v1968, 0.0
        %v2096 = vmax.f32 %v1970, 0.0
        %v2097 = vmax.f32 %v1972, 0.0
        %v2098 = vmax.f32 %v1976, 0.0
        %v2099 = vmax.f32 %v1978, 0.0
        %v2100 = vmax.f32 %v1980, 0.0
        %v2101 = vmax.f32 %v1982, 0.0
        %v2102 = vmax.f32 %v1986, 0.0
        %v2103 = vmax.f32 %v1988, 0.0
        %v2104 = vmax.f32 %v1990, 0.0
        %v2105 = vmax.f32 %v1992, 0.0
        %v2106 = vmax.f32 %v1996, 0.0
        %v2107 = vmax.f32 %v1998, 0.0
        %v2108 = vmax.f32 %v2000, 0.0
        %v2109 = vmax.f32 %v2002, 0.0
        %v2110 = vmax.f32 %v2006, 0.0
        %v2111 = vmax.f32 %v2008, 0.0
        %v2112 = vmax.f32 %v2010, 0.0
        %v2113 = vmax.f32 %v2012, 0.0
        %v2114 = vmax.f32 %v2016, 0.0
        %v2115 = vmax.f32 %v2018, 0.0
        %v2116 = vmax.f32 %v2020, 0.0
        %v2117 = vmax.f32 %v2022, 0.0
        %v2118 = vmax.f32 %v2026, 0.0
        %v2119 = vmax.f32 %v2028, 0.0
        %v2120 = vmax.f32 %v2030, 0.0
        %v2121 = vmax.f32 %v2032, 0.0
        %v2122 = vmax.f32 %v2036, 0.0
        %v2123 = vmax.f32 %v2038, 0.0
        %v2124 = vmax.f32 %v2040, 0.0
        %v2125 = vmax.f32 %v2042, 0.0
        %v2126 = vmax.f32 %v2046, 0.0
        %v2127 = vmax.f32 %v2048, 0.0
        %v2128 = vmax.f32 %v2050, 0.0
        %v2129 = vmax.f32 %v2052, 0.0
        %v2130 = vmax.f32 %v2056, 0.0
        %v2131 = vmax.f32 %v2058, 0.0
        %v2132 = vmax.f32 %v2060, 0.0
        %v2133 = vmax.f32 %v2062, 0.0
        %v2134 = vmax.f32 %v2066, 0.0
        %v2135 = vmax.f32 %v2068, 0.0
        %v2136 = vmax.f32 %v2070, 0.0
        %v2137 = vmax.f32 %v2072, 0.0
        %v2138 = vpack.c.bf16 %v2076, %v2074
        %v2139 = vpack.c.bf16 %v2077, %v2075
        %v2140 = vpack.c.bf16 %v2080, %v2078
        %v2141 = vpack.c.bf16 %v2081, %v2079
        %v2142 = vpack.c.bf16 %v2084, %v2082
        %v2143 = vpack.c.bf16 %v2085, %v2083
        %v2144 = vpack.c.bf16 %v2088, %v2086
        %v2145 = vpack.c.bf16 %v2089, %v2087
        %v2146 = vpack.c.bf16 %v2092, %v2090
        %v2147 = vpack.c.bf16 %v2093, %v2091
        %v2148 = vpack.c.bf16 %v2096, %v2094
        %v2149 = vpack.c.bf16 %v2097, %v2095
        %v2150 = vpack.c.bf16 %v2100, %v2098
        %v2151 = vpack.c.bf16 %v2101, %v2099
        %v2152 = vpack.c.bf16 %v2104, %v2102
        %v2153 = vpack.c.bf16 %v2105, %v2103
        %v2154 = vpack.c.bf16 %v2108, %v2106
        %v2155 = vpack.c.bf16 %v2109, %v2107
        %v2156 = vpack.c.bf16 %v2112, %v2110
        %v2157 = vpack.c.bf16 %v2113, %v2111
        %v2158 = vpack.c.bf16 %v2116, %v2114
        %v2159 = vpack.c.bf16 %v2117, %v2115
        %v2160 = vpack.c.bf16 %v2120, %v2118
        %v2161 = vpack.c.bf16 %v2121, %v2119
        %v2162 = vpack.c.bf16 %v2124, %v2122
        %v2163 = vpack.c.bf16 %v2125, %v2123
        %v2164 = vpack.c.bf16 %v2128, %v2126
        %v2165 = vpack.c.bf16 %v2129, %v2127
        %v2166 = vpack.c.bf16 %v2132, %v2130
        %v2167 = vpack.c.bf16 %v2133, %v2131
        %v2168 = vpack.c.bf16 %v2136, %v2134
        %v2169 = vpack.c.bf16 %v2137, %v2135
        %v2170 = vld [vmem:[#allocation8] sm:$0xf]
        %v2171 = vld [vmem:[#allocation8 + $0x4] sm:$0xf]
        %v2172 = vld [vmem:[#allocation8 + $0x8] sm:$0xf]
        %v2173 = vld [vmem:[#allocation8 + $0xc] sm:$0xf]
        %v2174 = vld [vmem:[#allocation8 + $0x10] sm:$0xf]
        %v2175 = vld [vmem:[#allocation8 + $0x14] sm:$0xf]
        %v2176 = vld [vmem:[#allocation8 + $0x18] sm:$0xf]
        %v2177 = vld [vmem:[#allocation8 + $0x1c] sm:$0xf]
        %v2178 = vld [vmem:[#allocation8 + $0x20] sm:$0xf]
        %v2179 = vld [vmem:[#allocation8 + $0x24] sm:$0xf]
        %v2180 = vld [vmem:[#allocation8 + $0x28] sm:$0xf]
        %v2181 = vld [vmem:[#allocation8 + $0x2c] sm:$0xf]
        %v2182 = vld [vmem:[#allocation8 + $0x30] sm:$0xf]
        %v2183 = vld [vmem:[#allocation8 + $0x34] sm:$0xf]
        %v2184 = vld [vmem:[#allocation8 + $0x38] sm:$0xf]
        %v2185 = vld [vmem:[#allocation8 + $0x3c] sm:$0xf]
        %v2186 = vld [vmem:[#allocation8 + $0x40] sm:$0xf]
        %v2187 = vld [vmem:[#allocation8 + $0x44] sm:$0xf]
        %v2188 = vld [vmem:[#allocation8 + $0x48] sm:$0xf]
        %v2189 = vld [vmem:[#allocation8 + $0x4c] sm:$0xf]
        %v2190 = vld [vmem:[#allocation8 + $0x50] sm:$0xf]
        %v2191 = vld [vmem:[#allocation8 + $0x54] sm:$0xf]
        %v2192 = vld [vmem:[#allocation8 + $0x58] sm:$0xf]
        %v2193 = vld [vmem:[#allocation8 + $0x5c] sm:$0xf]
        %v2194 = vld [vmem:[#allocation8 + $0x60] sm:$0xf]
        %v2195 = vld [vmem:[#allocation8 + $0x64] sm:$0xf]
        %v2196 = vld [vmem:[#allocation8 + $0x68] sm:$0xf]
        %v2197 = vld [vmem:[#allocation8 + $0x6c] sm:$0xf]
        %v2198 = vld [vmem:[#allocation8 + $0x70] sm:$0xf]
        %v2199 = vld [vmem:[#allocation8 + $0x74] sm:$0xf]
        %v2200 = vld [vmem:[#allocation8 + $0x78] sm:$0xf]
        %v2201 = vld [vmem:[#allocation8 + $0x7c] sm:$0xf]
        %v2202 = vld [vmem:[#allocation10] sm:$0x1]
        %v2204 = vlaneseq
        %v2205 = vshrl.u32 %v2204, 7
        %v2206 = vsub.s32 0, %v2205
        %v2207 = vrot.slane %v2202, %v2206
        %v2241 = vunpack.c.l.b16 %v2170
        %v2242 = vunpack.c.l.b16 %v2171
        %v2243 = vunpack.c.l.b16 %v2172
        %v2244 = vunpack.c.l.b16 %v2173
        %v2245 = vunpack.c.l.b16 %v2174
        %v2246 = vunpack.c.l.b16 %v2175
        %v2247 = vunpack.c.l.b16 %v2176
        %v2248 = vunpack.c.l.b16 %v2177
        %v2249 = vunpack.c.l.b16 %v2178
        %v2250 = vunpack.c.l.b16 %v2179
        %v2251 = vunpack.c.l.b16 %v2180
        %v2252 = vunpack.c.l.b16 %v2181
        %v2253 = vunpack.c.l.b16 %v2182
        %v2254 = vunpack.c.l.b16 %v2183
        %v2255 = vunpack.c.l.b16 %v2184
        %v2256 = vunpack.c.l.b16 %v2185
        %v2257 = vunpack.c.l.b16 %v2186
        %v2258 = vunpack.c.l.b16 %v2187
        %v2259 = vunpack.c.l.b16 %v2188
        %v2260 = vunpack.c.l.b16 %v2189
        %v2261 = vunpack.c.l.b16 %v2190
        %v2262 = vunpack.c.l.b16 %v2191
        %v2263 = vunpack.c.l.b16 %v2192
        %v2264 = vunpack.c.l.b16 %v2193
        %v2265 = vunpack.c.l.b16 %v2194
        %v2266 = vunpack.c.l.b16 %v2195
        %v2267 = vunpack.c.l.b16 %v2196
        %v2268 = vunpack.c.l.b16 %v2197
        %v2269 = vunpack.c.l.b16 %v2198
        %v2270 = vunpack.c.l.b16 %v2199
        %v2271 = vunpack.c.l.b16 %v2200
        %v2272 = vunpack.c.l.b16 %v2201
        %v2273 = vpack.c.b16 %v2242, %v2241
        %v2274 = vpack.c.b16 %v2244, %v2243
        %v2275 = vpack.c.b16 %v2246, %v2245
        %v2276 = vpack.c.b16 %v2248, %v2247
        %v2277 = vpack.c.b16 %v2250, %v2249
        %v2278 = vpack.c.b16 %v2252, %v2251
        %v2279 = vpack.c.b16 %v2254, %v2253
        %v2280 = vpack.c.b16 %v2256, %v2255
        %v2281 = vpack.c.b16 %v2258, %v2257
        %v2282 = vpack.c.b16 %v2260, %v2259
        %v2283 = vpack.c.b16 %v2262, %v2261
        %v2284 = vpack.c.b16 %v2264, %v2263
        %v2285 = vpack.c.b16 %v2266, %v2265
        %v2286 = vpack.c.b16 %v2268, %v2267
        %v2287 = vpack.c.b16 %v2270, %v2269
        %v2288 = vpack.c.b16 %v2272, %v2271
        %2305 = vmatprep.subr.bf16.mxu0 0
        %2306 = vmatpush1.bf16.msra.mxu0 %v2273
        %2307 = vmatprep.subr.bf16.mxu0 0
        %2308 = vmatpush1.bf16.msra.mxu0 %v2274
        %2309 = vmatprep.subr.bf16.mxu0 0
        %2310 = vmatpush1.bf16.msra.mxu0 %v2275
        %2311 = vmatprep.subr.bf16.mxu0 0
        %2312 = vmatpush1.bf16.msra.mxu0 %v2276
        %2313 = vmatprep.subr.bf16.mxu0 0
        %2314 = vmatpush1.bf16.msra.mxu0 %v2277
        %2315 = vmatprep.subr.bf16.mxu0 0
        %2316 = vmatpush1.bf16.msra.mxu0 %v2278
        %2317 = vmatprep.subr.bf16.mxu0 0
        %2318 = vmatpush1.bf16.msra.mxu0 %v2279
        %2319 = vmatprep.subr.bf16.mxu0 0
        %2320 = vmatpush1.bf16.msra.mxu0 %v2280
        %2321 = vmatprep.subr.bf16.mxu0 0
        %2322 = vmatpush1.bf16.msra.mxu0 %v2281
        %2323 = vmatprep.subr.bf16.mxu0 0
        %2324 = vmatpush1.bf16.msra.mxu0 %v2282
        %2325 = vmatprep.subr.bf16.mxu0 0
        %2326 = vmatpush1.bf16.msra.mxu0 %v2283
        %2327 = vmatprep.subr.bf16.mxu0 0
        %2328 = vmatpush1.bf16.msra.mxu0 %v2284
        %2329 = vmatprep.subr.bf16.mxu0 0
        %2330 = vmatpush1.bf16.msra.mxu0 %v2285
        %2331 = vmatprep.subr.bf16.mxu0 0
        %2332 = vmatpush1.bf16.msra.mxu0 %v2286
        %2333 = vmatprep.subr.bf16.mxu0 0
        %2334 = vmatpush1.bf16.msra.mxu0 %v2287
        %2335 = vmatprep.subr.bf16.mxu0 0
        %2336 = vmatpush1.bf16.msra.mxu0 %v2288
        %2337 = vmatprep.mubr.bf16.mxu0 %v2139
        %2338 = vmatmul.mubr.bf16.gmra.mrb[0].mxu0 %v2138
        %v2339 = vpop.f32.mrb[0].mxu0
        %v2340 = vadd.f32 %v2207, %v2339
        %v2341 = vpop.f32.mrb[0].mxu0
        %v2342 = vpop.f32.mrb[0].mxu0
        %v2343 = vadd.f32 %v2207, %v2342
        %v2344 = vpop.f32.mrb[0].mxu0
        %2345 = vmatprep.mubr.bf16.mxu0 %v2141
        %2346 = vmatmul.mubr.bf16.gmra.mrb[0].mxu0 %v2140
        %v2347 = vpop.f32.mrb[0].mxu0
        %v2348 = vadd.f32 %v2207, %v2347
        %v2349 = vpop.f32.mrb[0].mxu0
        %v2350 = vpop.f32.mrb[0].mxu0
        %v2351 = vadd.f32 %v2207, %v2350
        %v2352 = vpop.f32.mrb[0].mxu0
        %2353 = vmatprep.mubr.bf16.mxu0 %v2143
        %2354 = vmatmul.mubr.bf16.gmra.mrb[0].mxu0 %v2142
        %v2355 = vpop.f32.mrb[0].mxu0
        %v2356 = vadd.f32 %v2207, %v2355
        %v2357 = vpop.f32.mrb[0].mxu0
        %v2358 = vpop.f32.mrb[0].mxu0
        %v2359 = vadd.f32 %v2207, %v2358
        %v2360 = vpop.f32.mrb[0].mxu0
        %2361 = vmatprep.mubr.bf16.mxu0 %v2145
        %2362 = vmatmul.mubr.bf16.gmra.mrb[0].mxu0 %v2144
        %v2363 = vpop.f32.mrb[0].mxu0
        %v2364 = vadd.f32 %v2207, %v2363
        %v2365 = vpop.f32.mrb[0].mxu0
        %v2366 = vpop.f32.mrb[0].mxu0
        %v2367 = vadd.f32 %v2207, %v2366
        %v2368 = vpop.f32.mrb[0].mxu0
        %2369 = vmatprep.mubr.bf16.mxu0 %v2147
        %2370 = vmatmul.mubr.bf16.gmra.mrb[0].mxu0 %v2146
        %v2371 = vpop.f32.mrb[0].mxu0
        %v2372 = vadd.f32 %v2207, %v2371
        %v2373 = vpop.f32.mrb[0].mxu0
        %v2374 = vpop.f32.mrb[0].mxu0
        %v2375 = vadd.f32 %v2207, %v2374
        %v2376 = vpop.f32.mrb[0].mxu0
        %2377 = vmatprep.mubr.bf16.mxu0 %v2149
        %2378 = vmatmul.mubr.bf16.gmra.mrb[0].mxu0 %v2148
        %v2379 = vpop.f32.mrb[0].mxu0
        %v2380 = vadd.f32 %v2207, %v2379
        %v2381 = vpop.f32.mrb[0].mxu0
        %v2382 = vpop.f32.mrb[0].mxu0
        %v2383 = vadd.f32 %v2207, %v2382
        %v2384 = vpop.f32.mrb[0].mxu0
        %2385 = vmatprep.mubr.bf16.mxu0 %v2151
        %2386 = vmatmul.mubr.bf16.gmra.mrb[0].mxu0 %v2150
        %v2387 = vpop.f32.mrb[0].mxu0
        %v2388 = vadd.f32 %v2207, %v2387
        %v2389 = vpop.f32.mrb[0].mxu0
        %v2390 = vpop.f32.mrb[0].mxu0
        %v2391 = vadd.f32 %v2207, %v2390
        %v2392 = vpop.f32.mrb[0].mxu0
        %2393 = vmatprep.mubr.bf16.mxu0 %v2153
        %2394 = vmatmul.mubr.bf16.gmra.mrb[0].mxu0 %v2152
        %v2395 = vpop.f32.mrb[0].mxu0
        %v2396 = vadd.f32 %v2207, %v2395
        %v2397 = vpop.f32.mrb[0].mxu0
        %v2398 = vpop.f32.mrb[0].mxu0
        %v2399 = vadd.f32 %v2207, %v2398
        %v2400 = vpop.f32.mrb[0].mxu0
        %2401 = vmatprep.mubr.bf16.mxu0 %v2155
        %2402 = vmatmul.mubr.bf16.gmra.mrb[0].mxu0 %v2154
        %v2403 = vpop.f32.mrb[0].mxu0
        %v2404 = vadd.f32 %v2207, %v2403
        %v2405 = vpop.f32.mrb[0].mxu0
        %v2406 = vpop.f32.mrb[0].mxu0
        %v2407 = vadd.f32 %v2207, %v2406
        %v2408 = vpop.f32.mrb[0].mxu0
        %2409 = vmatprep.mubr.bf16.mxu0 %v2157
        %2410 = vmatmul.mubr.bf16.gmra.mrb[0].mxu0 %v2156
        %v2411 = vpop.f32.mrb[0].mxu0
        %v2412 = vadd.f32 %v2207, %v2411
        %v2413 = vpop.f32.mrb[0].mxu0
        %v2414 = vpop.f32.mrb[0].mxu0
        %v2415 = vadd.f32 %v2207, %v2414
        %v2416 = vpop.f32.mrb[0].mxu0
        %2417 = vmatprep.mubr.bf16.mxu0 %v2159
        %2418 = vmatmul.mubr.bf16.gmra.mrb[0].mxu0 %v2158
        %v2419 = vpop.f32.mrb[0].mxu0
        %v2420 = vadd.f32 %v2207, %v2419
        %v2421 = vpop.f32.mrb[0].mxu0
        %v2422 = vpop.f32.mrb[0].mxu0
        %v2423 = vadd.f32 %v2207, %v2422
        %v2424 = vpop.f32.mrb[0].mxu0
        %2425 = vmatprep.mubr.bf16.mxu0 %v2161
        %2426 = vmatmul.mubr.bf16.gmra.mrb[0].mxu0 %v2160
        %v2427 = vpop.f32.mrb[0].mxu0
        %v2428 = vadd.f32 %v2207, %v2427
        %v2429 = vpop.f32.mrb[0].mxu0
        %v2430 = vpop.f32.mrb[0].mxu0
        %v2431 = vadd.f32 %v2207, %v2430
        %v2432 = vpop.f32.mrb[0].mxu0
        %2433 = vmatprep.mubr.bf16.mxu0 %v2163
        %2434 = vmatmul.mubr.bf16.gmra.mrb[0].mxu0 %v2162
        %v2435 = vpop.f32.mrb[0].mxu0
        %v2436 = vadd.f32 %v2207, %v2435
        %v2437 = vpop.f32.mrb[0].mxu0
        %v2438 = vpop.f32.mrb[0].mxu0
        %v2439 = vadd.f32 %v2207, %v2438
        %v2440 = vpop.f32.mrb[0].mxu0
        %2441 = vmatprep.mubr.bf16.mxu0 %v2165
        %2442 = vmatmul.mubr.bf16.gmra.mrb[0].mxu0 %v2164
        %v2443 = vpop.f32.mrb[0].mxu0
        %v2444 = vadd.f32 %v2207, %v2443
        %v2445 = vpop.f32.mrb[0].mxu0
        %v2446 = vpop.f32.mrb[0].mxu0
        %v2447 = vadd.f32 %v2207, %v2446
        %v2448 = vpop.f32.mrb[0].mxu0
        %2449 = vmatprep.mubr.bf16.mxu0 %v2167
        %2450 = vmatmul.mubr.bf16.gmra.mrb[0].mxu0 %v2166
        %v2451 = vpop.f32.mrb[0].mxu0
        %v2452 = vadd.f32 %v2207, %v2451
        %v2453 = vpop.f32.mrb[0].mxu0
        %v2454 = vpop.f32.mrb[0].mxu0
        %v2455 = vadd.f32 %v2207, %v2454
        %v2456 = vpop.f32.mrb[0].mxu0
        %2457 = vmatprep.mubr.bf16.mxu0 %v2169
        %2458 = vmatmul.mubr.bf16.gmra.mrb[0].mxu0 %v2168
        %v2459 = vpop.f32.mrb[0].mxu0
        %v2460 = vadd.f32 %v2207, %v2459
        %v2461 = vpop.f32.mrb[0].mxu0
        %v2462 = vpop.f32.mrb[0].mxu0
        %v2463 = vadd.f32 %v2207, %v2462
        %v2464 = vpop.f32.mrb[0].mxu0
        %2465 = vdwg.mxu0
        %2466 = vst [vmem:[%s304] sm:$0xff] %v2340
        %2467 = vst [vmem:[%s304 + $0x8] sm:$0xff] %v2343
        %2468 = vst [vmem:[%s304 + $0x10] sm:$0xff] %v2348
        %2469 = vst [vmem:[%s304 + $0x18] sm:$0xff] %v2351
        %2470 = vst [vmem:[%s304 + $0x20] sm:$0xff] %v2356
        %2471 = vst [vmem:[%s304 + $0x28] sm:$0xff] %v2359
        %2472 = vst [vmem:[%s304 + $0x30] sm:$0xff] %v2364
        %2473 = vst [vmem:[%s304 + $0x38] sm:$0xff] %v2367
        %2474 = vst [vmem:[%s304 + $0x40] sm:$0xff] %v2372
        %2475 = vst [vmem:[%s304 + $0x48] sm:$0xff] %v2375
        %2476 = vst [vmem:[%s304 + $0x50] sm:$0xff] %v2380
        %2477 = vst [vmem:[%s304 + $0x58] sm:$0xff] %v2383
        %2478 = vst [vmem:[%s304 + $0x60] sm:$0xff] %v2388
        %2479 = vst [vmem:[%s304 + $0x68] sm:$0xff] %v2391
        %2480 = vst [vmem:[%s304 + $0x70] sm:$0xff] %v2396
        %2481 = vst [vmem:[%s304 + $0x78] sm:$0xff] %v2399
        %2482 = vst [vmem:[%s304 + $0x80] sm:$0xff] %v2404
        %2483 = vst [vmem:[%s304 + $0x88] sm:$0xff] %v2407
        %2484 = vst [vmem:[%s304 + $0x90] sm:$0xff] %v2412
        %2485 = vst [vmem:[%s304 + $0x98] sm:$0xff] %v2415
        %2486 = vst [vmem:[%s304 + $0xa0] sm:$0xff] %v2420
        %2487 = vst [vmem:[%s304 + $0xa8] sm:$0xff] %v2423
        %2488 = vst [vmem:[%s304 + $0xb0] sm:$0xff] %v2428
        %2489 = vst [vmem:[%s304 + $0xb8] sm:$0xff] %v2431
        %2490 = vst [vmem:[%s304 + $0xc0] sm:$0xff] %v2436
        %2491 = vst [vmem:[%s304 + $0xc8] sm:$0xff] %v2439
        %2492 = vst [vmem:[%s304 + $0xd0] sm:$0xff] %v2444
        %2493 = vst [vmem:[%s304 + $0xd8] sm:$0xff] %v2447
        %2494 = vst [vmem:[%s304 + $0xe0] sm:$0xff] %v2452
        %2495 = vst [vmem:[%s304 + $0xe8] sm:$0xff] %v2455
        %2496 = vst [vmem:[%s304 + $0xf0] sm:$0xff] %v2460
        %2497 = vst [vmem:[%s304 + $0xf8] sm:$0xff] %v2463
        %s2498 = sand.u32 %s142, 1
        %s2499 = scalar_lea.sflag [#allocation4], %s2498
        %s2500 = sand.u32 %s142, 1
        %s2501 = smul.addr %s2500, 256
        %s2502 = scalar_lea.vmem [#allocation11], %s2501
        // Predicated region
        $region61: #{tpu_custom_call.1} parent=39 // pred_check
          %p2503 = pneg %p152
        $region62: #{tpu_custom_call.1} parent=39 // pred_check_branch
          %2505 = sbr.rel (%p2503) target = $region64
        $region63: #{tpu_custom_call.1} parent=39 // pred_region
          %s2506 = smul.u32 32, %s24
          %s2507 = ssub.s32 38, %s2506
          %p2508 = scmp.lt.s32.totalorder %s2507, 32
          %s2509 = scalar_select %p2508, %s2507, 32
          %s2510 = smul.u32 128, %s2509
          %s2512 = ssub.s32 4096, %s2510
          %2513 = vsyncadd %s2499, %s2512
          %p2514 = scmp.ne.s32.totalorder 0, %s2510
          %s2515 = smul.addr %s2506, 128
          %s2516 = scalar_lea.hbm %s5, %s2515
          %s2517 = smul.u32 8, %s2509
          %s2518 = sshll.u32 %s2502, 4
          %s2519 = int_to_ptr.vmem [resolvable:$true] %s2518
          %s2520 = sshll.u32 %s2517, 4
          %2524 = dma.vmem_to_hbm [thread:$0]  (%p2514), %s2519, %s2520, %s2516, %s2499, 128, 128, 8
        $region64: #{tpu_custom_call.1} parent=39 // pred_fallthru
          _
      $region40: #{tpu_custom_call.1} parent=5 // pred_fallthru
        _
      %p2525 = scmp.le.s32.totalorder 2, %s19
      // Predicated region
      $region65: #{tpu_custom_call.1} parent=5 // pred_check
        %p2526 = pneg %p2525
      $region66: #{tpu_custom_call.1} parent=5 // pred_check_branch
        %2528 = sbr.rel (%p2526) target = $region68
      $region67: #{tpu_custom_call.1} parent=5 // pred_region
        %s2529 = ssub.s32 %s19, 2
        // Predicated region
        $region69: #{tpu_custom_call.1} parent=67 // pred_check
          %p2530 = pneg %p158
        $region70: #{tpu_custom_call.1} parent=67 // pred_check_branch
          %2532 = sbr.rel (%p2530) target = $region72
        $region71: #{tpu_custom_call.1} parent=67 // pred_region
          %s2533 = sand.u32 %s143, 1
          %s2534 = scalar_lea.sflag [#allocation4], %s2533
          %s2535 = sand.u32 %s143, 1
          %s2536 = smul.addr %s2535, 256
          %s2537 = scalar_lea.vmem [#allocation11], %s2536
          %2538 = dma.done %s2534, 4096
        $region72: #{tpu_custom_call.1} parent=67 // pred_fallthru
          _
      $region68: #{tpu_custom_call.1} parent=5 // pred_fallthru
        _
    $region6: #{tpu_custom_call.1} parent=1 // loop_footer
      %s23 = sadd.s32 1, %s19
    $region7: #{tpu_custom_call.1} parent=1 // loop_footer_branch
      %18 = sbr.rel target = $region3
    $region8: #{tpu_custom_call.1} parent=1 // loop_exit
      _
    %2539 = vsyncpa [#allocation3], 1
    %s2540 = scalar_lea.sflag [#allocation3], 1
    %2541 = vsyncpa %s2540, 1
    %2542 = vsyncpa [#allocation6], 1
    %2543 = vsyncpa [#allocation9], 1
    %2544 = vsyncpa [#allocation4], 1
    %s2545 = scalar_lea.sflag [#allocation4], 1
    %2546 = vsyncpa %s2545, 1

</llo_original>
